<compile_context>
chip_gen: v5e
topology: v5e:2x2
jax: 0.10.0
libtpu: 0.0.40
codegen_flags: <defaults>
</compile_context>

<pallas_src>
import numpy as np
import jax
import jax.numpy as jnp
from jax.experimental import pallas as pl
from jax.experimental.pallas import tpu as pltpu


# ---------------------------------------------------------------------------
# Model dimensions
# ---------------------------------------------------------------------------
B = 256                    # batch (stacked so M fills MXU rows; launch-overhead amortized)
N_NUM = 4                  # D.n_num_features
CATEGORY_SIZES = [3, 5]    # D.get_category_sizes('train')
N_CAT = len(CATEGORY_SIZES)
SUM_CAT = sum(CATEGORY_SIZES)                                   # 8
CAT_OFFSETS = [int(x) for x in ([0] + list(np.cumsum(CATEGORY_SIZES)[:-1]))]  # host consts
D_NUM_EMB = 8
D_CAT_EMB = 8
D_IN = N_NUM * D_NUM_EMB + N_CAT * D_CAT_EMB                    # 48
D_LAYER = 64               # MLP block width
D_HIDDEN_HEAD = 32         # C.pretrain.d_hidden_head
D_OUT_BACKBONE = 1

D_K1 = 16                  # merged stage-1 K: [num(4) | onehot(8) | 1.0 | pad(3)]
ONE_ROW = N_NUM + SUM_CAT  # 12 : row of w1 slab carrying the folded first-layer bias
ONE_LANE_LOCAL = ONE_ROW - N_NUM  # 8 : same lane, local to the 12-lane one-hot block

D_STAGE3 = 128             # lane-padded [head.first(32) | +bb(1) | -bb(1) | pad]
D_SLAB = 128               # lane-padded [num(4) | cat(8) | bb(1) | pad]
BB_POS_COL = D_HIDDEN_HEAD        # 32  (+backbone-head column in stage-3 slab)
BB_NEG_COL = D_HIDDEN_HEAD + 1    # 33  (-backbone-head column in stage-3 slab)
BB_OUT_COL = N_NUM + SUM_CAT      # 12  (backbone-head column in output slab)
D_BIAS = 128 + D_STAGE3 + D_SLAB  # 384 : [b2 | pad(64)] [b3] [b4], 128-aligned segments


# ---------------------------------------------------------------------------
# Fused Pallas kernel: embeddings + backbone + all heads, one lane-dense output
# ---------------------------------------------------------------------------
def fused_kernel(xn_ref, xc_ref, w1_ref, w2_ref, w3_ref, w4_ref, b_ref, out_ref):
    f32 = jnp.float32
    bf16 = jnp.bfloat16
    tb = xn_ref.shape[0]

    # --- build merged stage-1 operand: [x_num | onehot(offset vocab) | 1 | 0] ---
    cat = xc_ref[...]                                            # (tb, 2) int32
    lane = jax.lax.broadcasted_iota(jnp.int32, (tb, D_K1 - N_NUM), 1)   # 12 lanes
    hit = lane == ONE_LANE_LOCAL                                 # constant-1 lane (folded b1)
    for c in range(N_CAT):                                       # static loop (2)
        # out-of-range category indices silently give an all-zero one-hot row
        # (embedding contribution dropped); inputs are assumed validated upstream.
        hit = jnp.logical_or(hit, (cat[:, c:c + 1] + CAT_OFFSETS[c]) == lane)
    x1 = jnp.concatenate([xn_ref[...], hit.astype(f32)], axis=1).astype(bf16)  # (tb,16)

    # --- lane-tile-aligned bias slices of one (1, 384) slab (free views) ---
    b2 = b_ref[:, 0:D_LAYER]
    b3 = b_ref[:, 128:128 + D_STAGE3]
    b4 = b_ref[:, 256:256 + D_SLAB]

    # --- stage 1: [num-emb | cat-emb | b1] folded into ONE (16,64) matmul ---
    h = jnp.dot(x1, w1_ref[...], preferred_element_type=f32)
    h = jnp.maximum(h, 0.0)

    # --- stage 2: backbone block 2 ---
    h = jnp.dot(h.astype(bf16), w2_ref[...], preferred_element_type=f32) + b2
    h = jnp.maximum(h, 0.0)

    # --- stage 3: fused [head.first(32) | +bb | -bb | pad]; plain ReLU on all lanes.
    #     bb passes through linearly as relu(bb) - relu(-bb), reconstructed in stage 4.
    t = jnp.dot(h.astype(bf16), w3_ref[...], preferred_element_type=f32) + b3
    u = jnp.maximum(t, 0.0)

    # --- stage 4: fused [NLinear num head | all cat heads | bb reconstruction | pad] ---
    # TODO(synk): if tighter bb accuracy is ever needed, emit bb from the f32 stage-3
    # column instead of routing it through the bf16 stage-4 matmul.
    out_ref[...] = (
        jnp.dot(u.astype(bf16), w4_ref[...], preferred_element_type=f32) + b4
    )


# ---------------------------------------------------------------------------
# One-time parameter packing (exact linear refolds; done outside the hot path)
# ---------------------------------------------------------------------------
def prepare_packed_params(p):
    f32, bf16 = jnp.float32, jnp.bfloat16
    w1 = p["w1"].astype(f32)                       # (48, 64)
    w1_num = w1[: N_NUM * D_NUM_EMB]               # (32, 64)
    w1_cat = w1[N_NUM * D_NUM_EMB:]                # (16, 64)

    # fold the per-feature linear numeric embedding into block 1
    w1n = jnp.einsum("fj,fjk->fk", p["num_emb_w"],
                     w1_num.reshape(N_NUM, D_NUM_EMB, D_LAYER))          # (4, 64)

    # fold the categorical embedding lookup into a (SUM_CAT, 64) table
    w1_cat_r = w1_cat.reshape(N_CAT, D_CAT_EMB, D_LAYER)
    rows = []
    for c, sz in enumerate(CATEGORY_SIZES):
        tbl = p["cat_emb_table"][CAT_OFFSETS[c]:CAT_OFFSETS[c] + sz]     # (sz, 8)
        rows.append(tbl @ w1_cat_r[c])                                   # (sz, 64)
    w1c = jnp.concatenate(rows, axis=0)                                  # (8, 64)

    b1_eff = (p["b1"]
              + p["num_emb_b"].reshape(1, -1) @ w1_num
              + p["cat_emb_bias"].reshape(1, -1) @ w1_cat)               # (1, 64)

    # merged stage-1 slab (16,64): rows 0-3 num, 4-11 cat, 12 = folded bias, 13-15 = 0
    w1_slab = jnp.zeros((D_K1, D_LAYER), f32)
    w1_slab = w1_slab.at[:N_NUM].set(w1n)
    w1_slab = w1_slab.at[N_NUM:N_NUM + SUM_CAT].set(w1c)
    w1_slab = w1_slab.at[ONE_ROW].set(b1_eff[0])

    # stage-3 slab: [head.first (32) | +backbone.mlp.head | -backbone.mlp.head | pad]
    w3 = jnp.zeros((D_LAYER, D_STAGE3), f32)
    w3 = w3.at[:, :D_HIDDEN_HEAD].set(p["wf"])
    w3 = w3.at[:, BB_POS_COL:BB_POS_COL + 1].set(p["wbh"])
    w3 = w3.at[:, BB_NEG_COL:BB_NEG_COL + 1].set(-p["wbh"])
    b3 = jnp.zeros((1, D_STAGE3), f32)
    b3 = b3.at[:, :D_HIDDEN_HEAD].set(p["bf"])
    b3 = b3.at[:, BB_POS_COL].set(p["bbh"][0, 0])
    b3 = b3.at[:, BB_NEG_COL].set(-p["bbh"][0, 0])

    # stage-4 slab: [num(4) | cat(8) | bb = relu(bb) - relu(-bb) | pad]
    w4 = jnp.zeros((D_STAGE3, D_SLAB), f32)
    w4 = w4.at[:D_HIDDEN_HEAD, :N_NUM].set(p["wn"])
    w4 = w4.at[:D_HIDDEN_HEAD, N_NUM:N_NUM + SUM_CAT].set(p["wc"])
    w4 = w4.at[BB_POS_COL, BB_OUT_COL].set(1.0)
    w4 = w4.at[BB_NEG_COL, BB_OUT_COL].set(-1.0)
    b4 = jnp.zeros((1, D_SLAB), f32)
    b4 = b4.at[:, :N_NUM].set(p["bn"])
    b4 = b4.at[:, N_NUM:N_NUM + SUM_CAT].set(p["bc"])

    # lane-aligned bias slab (1,384): [b2 | 64 zeros] [b3 (128)] [b4 (128)]
    b2_pad = jnp.zeros((1, 128), f32).at[:, :D_LAYER].set(p["b2"])
    b_all = jnp.concatenate([b2_pad, b3, b4], axis=1).astype(f32)        # (1, 384)

    return {
        "w1": w1_slab.astype(bf16), "w2": p["w2"].astype(bf16),
        "w3": w3.astype(bf16), "w4": w4.astype(bf16), "b_all": b_all,
    }


# ---------------------------------------------------------------------------
# Chip-adaptive grid: 1 step on single-TC v5e/v6e, 2 parallel steps on v7x
# ---------------------------------------------------------------------------
def _grid_steps_for_device():
    try:
        kind = jax.devices()[0].device_kind.lower()
    except Exception:
        return 1
    return 2 if "v7" in kind else 1


# ---------------------------------------------------------------------------
# Forward: one pallas_call, lane-dense output slab, sliced in the wrapper
# ---------------------------------------------------------------------------
def pretrain_model_forward(x_num, x_cat, packed, grid_steps=None):
    nb = x_num.shape[0]
    steps = grid_steps if grid_steps is not None else _grid_steps_for_device()
    if steps < 1 or nb % steps != 0 or (nb // steps) % 8 != 0:
        steps = 1
    tile_b = nb // steps

    full = lambda shape: pl.BlockSpec(shape, lambda i: (0, 0))

    weight_elems = (D_K1 * D_LAYER + D_LAYER * D_LAYER
                    + D_LAYER * D_STAGE3 + D_STAGE3 * D_SLAB)
    cost = pl.CostEstimate(
        flops=2 * nb * weight_elems,
        transcendentals=0,
        bytes_accessed=(nb * N_NUM * 4 + nb * N_CAT * 4
                        + weight_elems * 2 + D_BIAS * 4 + nb * D_SLAB * 4),
    )

    out_slab = pl.pallas_call(
        fused_kernel,
        out_shape=jax.ShapeDtypeStruct((nb, D_SLAB), jnp.float32),
        grid=(steps,),
        in_specs=[
            pl.BlockSpec((tile_b, N_NUM), lambda i: (i, 0)),   # x_num tile
            pl.BlockSpec((tile_b, N_CAT), lambda i: (i, 0)),   # x_cat tile (int32)
            full((D_K1, D_LAYER)),                             # merged [w1n|w1c|b1|0]
            full((D_LAYER, D_LAYER)),                          # w2
            full((D_LAYER, D_STAGE3)),                         # [wf | +wbh | -wbh | 0]
            full((D_STAGE3, D_SLAB)),                          # [wn | wc | bb recon | 0]
            full((1, D_BIAS)),                                 # [b2|pad | b3 | b4]
        ],
        out_specs=pl.BlockSpec((tile_b, D_SLAB), lambda i: (i, 0)),
        compiler_params=pltpu.CompilerParams(
            dimension_semantics=("parallel",)),
        cost_estimate=cost,
    )(x_num, x_cat.astype(jnp.int32),
      packed["w1"], packed["w2"], packed["w3"], packed["w4"], packed["b_all"])

    num_out = out_slab[:, :N_NUM]
    cat_out = []
    start = N_NUM
    for sz in CATEGORY_SIZES:
        cat_out.append(out_slab[:, start:start + sz])
        start += sz
    bb_head = out_slab[:, BB_OUT_COL:BB_OUT_COL + 1]
    return (num_out, cat_out), bb_head


# ---------------------------------------------------------------------------
# Pure-JAX reference of the original (unfused) forward — correctness oracle
# ---------------------------------------------------------------------------
def reference_forward(x_num, x_cat, p):
    nb = x_num.shape[0]
    x_num_emb = x_num[:, :, None] * p["num_emb_w"][None] + p["num_emb_b"][None]
    x_num_flat = x_num_emb.reshape(nb, -1)
    idx = x_cat + jnp.asarray(np.asarray(CAT_OFFSETS, np.int32))[None, :]
    x_cat_emb = p["cat_emb_table"][idx] + p["cat_emb_bias"][None]
    x_cat_flat = x_cat_emb.reshape(nb, -1)
    x = jnp.concatenate([x_num_flat, x_cat_flat], axis=1)
    h = jnp.maximum(x @ p["w1"] + p["b1"], 0.0)
    h = jnp.maximum(h @ p["w2"] + p["b2"], 0.0)
    bb_head = h @ p["wbh"] + p["bbh"]
    z = jnp.maximum(h @ p["wf"] + p["bf"], 0.0)
    num_out = z @ p["wn"] + p["bn"]
    cat_concat = z @ p["wc"] + p["bc"]
    cat_out, s = [], 0
    for sz in CATEGORY_SIZES:
        cat_out.append(cat_concat[:, s:s + sz])
        s += sz
    return (num_out, cat_out), bb_head


# ---------------------------------------------------------------------------
# Deterministic synthetic parameters (not a checkpoint load)
# ---------------------------------------------------------------------------
def init_params(key):
    ks = jax.random.split(key, 16)
    u = lambda k, shape, s=0.1: jax.random.uniform(k, shape, jnp.float32, -s, s)
    return {
        "num_emb_w": u(ks[0], (N_NUM, D_NUM_EMB)),
        "num_emb_b": u(ks[1], (N_NUM, D_NUM_EMB)),
        "cat_emb_table": u(ks[2], (SUM_CAT, D_CAT_EMB)),
        "cat_emb_bias": u(ks[3], (N_CAT, D_CAT_EMB)),
        "w1": u(ks[4], (D_IN, D_LAYER)),   "b1": u(ks[5], (1, D_LAYER)),
        "w2": u(ks[6], (D_LAYER, D_LAYER)), "b2": u(ks[7], (1, D_LAYER)),
        "wbh": u(ks[8], (D_LAYER, D_OUT_BACKBONE)), "bbh": u(ks[9], (1, D_OUT_BACKBONE)),
        "wf": u(ks[10], (D_LAYER, D_HIDDEN_HEAD)),  "bf": u(ks[11], (1, D_HIDDEN_HEAD)),
        "wn": u(ks[12], (D_HIDDEN_HEAD, N_NUM)),    "bn": u(ks[13], (1, N_NUM)),
        "wc": u(ks[14], (D_HIDDEN_HEAD, SUM_CAT)),  "bc": u(ks[15], (1, SUM_CAT)),
    }


if __name__ == "__main__":
    key = jax.random.PRNGKey(0)
    k_p, k_num, k_cat = jax.random.split(key, 3)

    raw = init_params(k_p)
    packed = prepare_packed_params(raw)

    x_num = jax.random.normal(k_num, (B, N_NUM), jnp.float32)
    x_cat = jnp.stack(
        [jax.random.randint(jax.random.fold_in(k_cat, i), (B,), 0, sz)
         for i, sz in enumerate(CATEGORY_SIZES)], axis=1).astype(jnp.int32)

    steps = _grid_steps_for_device()     # static per-process; keep out of jit args
    fwd = jax.jit(lambda xn, xc, pk: pretrain_model_forward(xn, xc, pk, steps))
    (num_out, cat_out), bb_head = fwd(x_num, x_cat, packed)
    jax.block_until_ready((num_out, cat_out, bb_head))

    assert num_out.shape == (B, N_NUM)
    assert [c.shape for c in cat_out] == [(B, sz) for sz in CATEGORY_SIZES]
    assert bb_head.shape == (B, D_OUT_BACKBONE)

    # correctness vs pure-JAX reference (loose tol: bf16 MXU operands in the kernel)
    (num_ref, cat_ref_list), bb_ref = reference_forward(x_num, x_cat, raw)
    tol = 2e-2
    assert float(jnp.max(jnp.abs(num_out - num_ref))) < tol
    for a, r in zip(cat_out, cat_ref_list):
        assert float(jnp.max(jnp.abs(a - r))) < tol
    assert float(jnp.max(jnp.abs(bb_head - bb_ref))) < tol

    # TODO(synk): transformer / TargetHead / CLSHead config branches are not
    # instantiated by this MLP config and are not implemented here.
    print("KERNEL_OK")
</pallas_src>

<mosaic_0001>
module attributes {stable_mosaic.version = 11 : i64} {
  func.func @fused_kernel(%arg0: i32, %arg1: memref<256x4xf32, #tpu.memory_space<vmem>>, %arg2: memref<256x2xi32, #tpu.memory_space<vmem>>, %arg3: memref<16x64xbf16, #tpu.memory_space<vmem>>, %arg4: memref<64x64xbf16, #tpu.memory_space<vmem>>, %arg5: memref<64x128xbf16, #tpu.memory_space<vmem>>, %arg6: memref<128x128xbf16, #tpu.memory_space<vmem>>, %arg7: memref<1x384xf32, #tpu.memory_space<vmem>>, %arg8: memref<256x128xf32, #tpu.memory_space<vmem>>) attributes {dimension_semantics = [#tpu.dimension_semantics<parallel>], iteration_bounds = array<i64: 1>, scalar_prefetch = 0 : i64, scratch_operands = 0 : i64, tpu.core_type = #tpu.core_type<tc>, window_params = [{transform_indices = @transform_0, window_bounds = array<i64: 256, 4>}, {transform_indices = @transform_1, window_bounds = array<i64: 256, 2>}, {pipeline_mode = #tpu.pipeline_mode<synchronous>, transform_indices = @transform_2, window_bounds = array<i64: 16, 64>}, {pipeline_mode = #tpu.pipeline_mode<synchronous>, transform_indices = @transform_3, window_bounds = array<i64: 64, 64>}, {pipeline_mode = #tpu.pipeline_mode<synchronous>, transform_indices = @transform_4, window_bounds = array<i64: 64, 128>}, {pipeline_mode = #tpu.pipeline_mode<synchronous>, transform_indices = @transform_5, window_bounds = array<i64: 128, 128>}, {pipeline_mode = #tpu.pipeline_mode<synchronous>, transform_indices = @transform_6, window_bounds = array<i64: 1, 384>}, {transform_indices = @transform_7, window_bounds = array<i64: 256, 128>}]} {
    %c0 = arith.constant 0 : index
    %c0_0 = arith.constant 0 : index
    %0 = vector.load %arg2[%c0, %c0_0] : memref<256x2xi32, #tpu.memory_space<vmem>>, vector<256x2xi32>
    %1 = tpu.iota {dimensions = array<i32: 1>} : vector<256x12xi32>
    %c8_i32 = arith.constant 8 : i32
    %2 = vector.broadcast %c8_i32 : i32 to vector<256x12xi32>
    %3 = arith.cmpi eq, %1, %2 : vector<256x12xi32>
    %4 = vector.extract_strided_slice %0 {offsets = [0, 0], sizes = [256, 1], strides = [1, 1]} : vector<256x2xi32> to vector<256x1xi32>
    %c0_i32 = arith.constant 0 : i32
    %5 = vector.broadcast %c0_i32 : i32 to vector<256x1xi32>
    %6 = arith.addi %4, %5 : vector<256x1xi32>
    %7 = vector.broadcast %6 : vector<256x1xi32> to vector<256x12xi32>
    %8 = arith.cmpi eq, %7, %1 : vector<256x12xi32>
    %9 = arith.ori %3, %8 : vector<256x12xi1>
    %10 = vector.extract_strided_slice %0 {offsets = [0, 1], sizes = [256, 1], strides = [1, 1]} : vector<256x2xi32> to vector<256x1xi32>
    %c3_i32 = arith.constant 3 : i32
    %11 = vector.broadcast %c3_i32 : i32 to vector<256x1xi32>
    %12 = arith.addi %10, %11 : vector<256x1xi32>
    %13 = vector.broadcast %12 : vector<256x1xi32> to vector<256x12xi32>
    %14 = arith.cmpi eq, %13, %1 : vector<256x12xi32>
    %15 = arith.ori %9, %14 : vector<256x12xi1>
    %c0_1 = arith.constant 0 : index
    %c0_2 = arith.constant 0 : index
    %16 = vector.load %arg1[%c0_1, %c0_2] : memref<256x4xf32, #tpu.memory_space<vmem>>, vector<256x4xf32>
    %17 = arith.extui %15 : vector<256x12xi1> to vector<256x12xi32>
    %18 = arith.sitofp %17 : vector<256x12xi32> to vector<256x12xf32>
    %19 = tpu.concatenate %16, %18 in 1 : vector<256x4xf32>, vector<256x12xf32> -> vector<256x16xf32>
    %20 = arith.truncf %19 : vector<256x16xf32> to vector<256x16xbf16>
    %c0_3 = arith.constant 0 : index
    %c0_4 = arith.constant 0 : index
    %21 = vector.load %arg7[%c0_3, %c0_4] : memref<1x384xf32, #tpu.memory_space<vmem>>, vector<1x64xf32>
    %c0_5 = arith.constant 0 : index
    %c128 = arith.constant 128 : index
    %22 = vector.load %arg7[%c0_5, %c128] : memref<1x384xf32, #tpu.memory_space<vmem>>, vector<1x128xf32>
    %c0_6 = arith.constant 0 : index
    %c256 = arith.constant 256 : index
    %23 = vector.load %arg7[%c0_6, %c256] : memref<1x384xf32, #tpu.memory_space<vmem>>, vector<1x128xf32>
    %c0_7 = arith.constant 0 : index
    %c0_8 = arith.constant 0 : index
    %24 = vector.load %arg3[%c0_7, %c0_8] : memref<16x64xbf16, #tpu.memory_space<vmem>>, vector<16x64xbf16>
    %cst = arith.constant dense<0.000000e+00> : vector<256x64xf32>
    %25 = tpu.matmul %20, %24, %cst {dimension_numbers = #tpu.dot_dimension_numbers<[1], [0], [0], [1], [0, 0, 1, 1], [], []>} : vector<256x16xbf16>, vector<16x64xbf16>, vector<256x64xf32> -> vector<256x64xf32>
    %cst_9 = arith.constant 0.000000e+00 : f32
    %26 = vector.broadcast %cst_9 : f32 to vector<256x64xf32>
    %27 = arith.maximumf %25, %26 : vector<256x64xf32>
    %28 = arith.truncf %27 : vector<256x64xf32> to vector<256x64xbf16>
    %c0_10 = arith.constant 0 : index
    %c0_11 = arith.constant 0 : index
    %29 = vector.load %arg4[%c0_10, %c0_11] : memref<64x64xbf16, #tpu.memory_space<vmem>>, vector<64x64xbf16>
    %cst_12 = arith.constant dense<0.000000e+00> : vector<256x64xf32>
    %30 = tpu.matmul %28, %29, %cst_12 {dimension_numbers = #tpu.dot_dimension_numbers<[1], [0], [0], [1], [0, 0, 1, 1], [], []>} : vector<256x64xbf16>, vector<64x64xbf16>, vector<256x64xf32> -> vector<256x64xf32>
    %31 = vector.broadcast %21 : vector<1x64xf32> to vector<256x64xf32>
    %32 = arith.addf %30, %31 : vector<256x64xf32>
    %cst_13 = arith.constant 0.000000e+00 : f32
    %33 = vector.broadcast %cst_13 : f32 to vector<256x64xf32>
    %34 = arith.maximumf %32, %33 : vector<256x64xf32>
    %35 = arith.truncf %34 : vector<256x64xf32> to vector<256x64xbf16>
    %c0_14 = arith.constant 0 : index
    %c0_15 = arith.constant 0 : index
    %36 = vector.load %arg5[%c0_14, %c0_15] : memref<64x128xbf16, #tpu.memory_space<vmem>>, vector<64x128xbf16>
    %cst_16 = arith.constant dense<0.000000e+00> : vector<256x128xf32>
    %37 = tpu.matmul %35, %36, %cst_16 {dimension_numbers = #tpu.dot_dimension_numbers<[1], [0], [0], [1], [0, 0, 1, 1], [], []>} : vector<256x64xbf16>, vector<64x128xbf16>, vector<256x128xf32> -> vector<256x128xf32>
    %38 = vector.broadcast %22 : vector<1x128xf32> to vector<256x128xf32>
    %39 = arith.addf %37, %38 : vector<256x128xf32>
    %cst_17 = arith.constant 0.000000e+00 : f32
    %40 = vector.broadcast %cst_17 : f32 to vector<256x128xf32>
    %41 = arith.maximumf %39, %40 : vector<256x128xf32>
    %42 = arith.truncf %41 : vector<256x128xf32> to vector<256x128xbf16>
    %c0_18 = arith.constant 0 : index
    %c0_19 = arith.constant 0 : index
    %43 = vector.load %arg6[%c0_18, %c0_19] : memref<128x128xbf16, #tpu.memory_space<vmem>>, vector<128x128xbf16>
    %cst_20 = arith.constant dense<0.000000e+00> : vector<256x128xf32>
    %44 = tpu.matmul %42, %43, %cst_20 {dimension_numbers = #tpu.dot_dimension_numbers<[1], [0], [0], [1], [0, 0, 1, 1], [], []>} : vector<256x128xbf16>, vector<128x128xbf16>, vector<256x128xf32> -> vector<256x128xf32>
    %45 = vector.broadcast %23 : vector<1x128xf32> to vector<256x128xf32>
    %46 = arith.addf %44, %45 : vector<256x128xf32>
    %c0_21 = arith.constant 0 : index
    %c0_22 = arith.constant 0 : index
    %47 = vector.load %arg8[%c0_21, %c0_22] : memref<256x128xf32, #tpu.memory_space<vmem>>, vector<256x128xf32>
    tpu.vector_store %arg8[%c0_21, %c0_22], %46 {strides = array<i32>} : memref<256x128xf32, #tpu.memory_space<vmem>>, vector<256x128xf32>,
    return
  }
  func.func @transform_0(%arg0: i32) -> (i32, i32) {
    %c0_i32 = arith.constant 0 : i32
    %c0_i32_0 = arith.constant 0 : i32
    return %arg0, %c0_i32 : i32, i32
  }
  func.func @transform_1(%arg0: i32) -> (i32, i32) {
    %c0_i32 = arith.constant 0 : i32
    %c0_i32_0 = arith.constant 0 : i32
    return %arg0, %c0_i32 : i32, i32
  }
  func.func @transform_2(%arg0: i32) -> (i32, i32) {
    %c0_i32 = arith.constant 0 : i32
    %c0_i32_0 = arith.constant 0 : i32
    %c0_i32_1 = arith.constant 0 : i32
    return %c0_i32, %c0_i32_0 : i32, i32
  }
  func.func @transform_3(%arg0: i32) -> (i32, i32) {
    %c0_i32 = arith.constant 0 : i32
    %c0_i32_0 = arith.constant 0 : i32
    %c0_i32_1 = arith.constant 0 : i32
    return %c0_i32, %c0_i32_0 : i32, i32
  }
  func.func @transform_4(%arg0: i32) -> (i32, i32) {
    %c0_i32 = arith.constant 0 : i32
    %c0_i32_0 = arith.constant 0 : i32
    %c0_i32_1 = arith.constant 0 : i32
    return %c0_i32, %c0_i32_0 : i32, i32
  }
  func.func @transform_5(%arg0: i32) -> (i32, i32) {
    %c0_i32 = arith.constant 0 : i32
    %c0_i32_0 = arith.constant 0 : i32
    %c0_i32_1 = arith.constant 0 : i32
    return %c0_i32, %c0_i32_0 : i32, i32
  }
  func.func @transform_6(%arg0: i32) -> (i32, i32) {
    %c0_i32 = arith.constant 0 : i32
    %c0_i32_0 = arith.constant 0 : i32
    %c0_i32_1 = arith.constant 0 : i32
    return %c0_i32, %c0_i32_0 : i32, i32
  }
  func.func @transform_7(%arg0: i32) -> (i32, i32) {
    %c0_i32 = arith.constant 0 : i32
    %c0_i32_0 = arith.constant 0 : i32
    return %arg0, %c0_i32 : i32, i32
  }
}

</mosaic_0001>

<llo_original>
// kernel: _lambda_.1
$region0: #{_lambda_.1}
  #allocation0 [shape = 'u32[]', space=smem, size = 0x4, offset = 0x4, fixed_abs, tag = 'smem constant byte address 0x4 - core index']
  #allocation1 [shape = 'u32[72,128]{1,0:T(1,128)}', space=vmem, size = 0x9000, scoped, tag = 'internal scratch']
  %s0 = inlined_call_operand.vmem [shape: f32[256,4], index: 0, kind: input, shape index: {}]
  %s1 = inlined_call_operand.vmem [shape: s32[256,2], index: 1, kind: input, shape index: {}]
  %s2 = inlined_call_operand.vmem [shape: bf16[16,64], index: 2, kind: input, shape index: {}]
  %s3 = inlined_call_operand.vmem [shape: bf16[64,64], index: 3, kind: input, shape index: {}]
  %s4 = inlined_call_operand.vmem [shape: bf16[64,128], index: 4, kind: input, shape index: {}]
  %s5 = inlined_call_operand.vmem [shape: bf16[128,128], index: 5, kind: input, shape index: {}]
  %s6 = inlined_call_operand.vmem [shape: f32[1,384], index: 6, kind: input, shape index: {}]
  %s7 = inlined_call_operand.vmem [shape: f32[256,128], index: 7, kind: output, shape index: {}]
  %s8 = sld [smem:[#allocation0]]
  $region38: #{_lambda_.1} parent=0
    _
  %s10 = ssub.s32 1, %s8
  %s11 = scalar_select 0, %s10, %s8
  // Predicated region
  $region2: #{_lambda_.1} parent=0 // pred_check
    _
  $region3: #{_lambda_.1} parent=0 // pred_check_branch
    %13 = sbr.rel (0) target = $region5
  $region4: #{_lambda_.1} parent=0 // pred_region
    _
  $region5: #{_lambda_.1} parent=0 // pred_fallthru
    _
  // Predicated region
  $region6: #{_lambda_.1} parent=0 // pred_check
    _
  $region7: #{_lambda_.1} parent=0 // pred_check_branch
    %15 = sbr.rel (0) target = $region9
  $region8: #{_lambda_.1} parent=0 // pred_region
    _
  $region9: #{_lambda_.1} parent=0 // pred_fallthru
    _
  // Predicated region
  $region10: #{_lambda_.1} parent=0 // pred_check
    _
  $region11: #{_lambda_.1} parent=0 // pred_check_branch
    %17 = sbr.rel (0) target = $region13
  $region12: #{_lambda_.1} parent=0 // pred_region
    _
  $region13: #{_lambda_.1} parent=0 // pred_fallthru
    _
  // Predicated region
  $region14: #{_lambda_.1} parent=0 // pred_check
    _
  $region15: #{_lambda_.1} parent=0 // pred_check_branch
    %19 = sbr.rel (0) target = $region17
  $region16: #{_lambda_.1} parent=0 // pred_region
    _
  $region17: #{_lambda_.1} parent=0 // pred_fallthru
    _
  // Predicated region
  $region18: #{_lambda_.1} parent=0 // pred_check
    _
  $region19: #{_lambda_.1} parent=0 // pred_check_branch
    %21 = sbr.rel (0) target = $region21
  $region20: #{_lambda_.1} parent=0 // pred_region
    _
  $region21: #{_lambda_.1} parent=0 // pred_fallthru
    _
  // Predicated region
  $region22: #{_lambda_.1} parent=0 // pred_check
    _
  $region23: #{_lambda_.1} parent=0 // pred_check_branch
    %23 = sbr.rel (0) target = $region25
  $region24: #{_lambda_.1} parent=0 // pred_region
    _
  $region25: #{_lambda_.1} parent=0 // pred_fallthru
    _
  // Predicated region
  $region26: #{_lambda_.1} parent=0 // pred_check
    _
  $region27: #{_lambda_.1} parent=0 // pred_check_branch
    %25 = sbr.rel (0) target = $region29
  $region28: #{_lambda_.1} parent=0 // pred_region
    _
  $region29: #{_lambda_.1} parent=0 // pred_fallthru
    _
  %v27 = vld [vmem:[%s1] sm:$0xff]
  %v28 = vld [vmem:[%s1 + $0x8] sm:$0xff]
  %v29 = vld [vmem:[%s1 + $0x10] sm:$0xff]
  %v30 = vld [vmem:[%s1 + $0x18] sm:$0xff]
  %v31 = vld [vmem:[%s1 + $0x20] sm:$0xff]
  %v32 = vld [vmem:[%s1 + $0x28] sm:$0xff]
  %v33 = vld [vmem:[%s1 + $0x30] sm:$0xff]
  %v34 = vld [vmem:[%s1 + $0x38] sm:$0xff]
  %v35 = vld [vmem:[%s1 + $0x40] sm:$0xff]
  %v36 = vld [vmem:[%s1 + $0x48] sm:$0xff]
  %v37 = vld [vmem:[%s1 + $0x50] sm:$0xff]
  %v38 = vld [vmem:[%s1 + $0x58] sm:$0xff]
  %v39 = vld [vmem:[%s1 + $0x60] sm:$0xff]
  %v40 = vld [vmem:[%s1 + $0x68] sm:$0xff]
  %v41 = vld [vmem:[%s1 + $0x70] sm:$0xff]
  %v42 = vld [vmem:[%s1 + $0x78] sm:$0xff]
  %v43 = vld [vmem:[%s1 + $0x80] sm:$0xff]
  %v44 = vld [vmem:[%s1 + $0x88] sm:$0xff]
  %v45 = vld [vmem:[%s1 + $0x90] sm:$0xff]
  %v46 = vld [vmem:[%s1 + $0x98] sm:$0xff]
  %v47 = vld [vmem:[%s1 + $0xa0] sm:$0xff]
  %v48 = vld [vmem:[%s1 + $0xa8] sm:$0xff]
  %v49 = vld [vmem:[%s1 + $0xb0] sm:$0xff]
  %v50 = vld [vmem:[%s1 + $0xb8] sm:$0xff]
  %v51 = vld [vmem:[%s1 + $0xc0] sm:$0xff]
  %v52 = vld [vmem:[%s1 + $0xc8] sm:$0xff]
  %v53 = vld [vmem:[%s1 + $0xd0] sm:$0xff]
  %v54 = vld [vmem:[%s1 + $0xd8] sm:$0xff]
  %v55 = vld [vmem:[%s1 + $0xe0] sm:$0xff]
  %v56 = vld [vmem:[%s1 + $0xe8] sm:$0xff]
  %v57 = vld [vmem:[%s1 + $0xf0] sm:$0xff]
  %v58 = vld [vmem:[%s1 + $0xf8] sm:$0xff]
  %v59 = vlaneseq
  %v60 = vand.u32 %v59, 127
  %vm61 = vcmp.eq.s32.totalorder %v60, 8
  %62 = vset.pattern.permute.xlu0 0
  %63 = vperm.xlu0 %62, %v27
  %v64 = vpop.permute.xlu0 %63
  %65 = vset.pattern.permute.xlu0 0
  %66 = vperm.xlu0 %65, %v28
  %v67 = vpop.permute.xlu0 %66
  %68 = vset.pattern.permute.xlu0 0
  %69 = vperm.xlu0 %68, %v29
  %v70 = vpop.permute.xlu0 %69
  %71 = vset.pattern.permute.xlu0 0
  %72 = vperm.xlu0 %71, %v30
  %v73 = vpop.permute.xlu0 %72
  %74 = vset.pattern.permute.xlu0 0
  %75 = vperm.xlu0 %74, %v31
  %v76 = vpop.permute.xlu0 %75
  %77 = vset.pattern.permute.xlu0 0
  %78 = vperm.xlu0 %77, %v32
  %v79 = vpop.permute.xlu0 %78
  %80 = vset.pattern.permute.xlu0 0
  %81 = vperm.xlu0 %80, %v33
  %v82 = vpop.permute.xlu0 %81
  %83 = vset.pattern.permute.xlu0 0
  %84 = vperm.xlu0 %83, %v34
  %v85 = vpop.permute.xlu0 %84
  %86 = vset.pattern.permute.xlu0 0
  %87 = vperm.xlu0 %86, %v35
  %v88 = vpop.permute.xlu0 %87
  %89 = vset.pattern.permute.xlu0 0
  %90 = vperm.xlu0 %89, %v36
  %v91 = vpop.permute.xlu0 %90
  %92 = vset.pattern.permute.xlu0 0
  %93 = vperm.xlu0 %92, %v37
  %v94 = vpop.permute.xlu0 %93
  %95 = vset.pattern.permute.xlu0 0
  %96 = vperm.xlu0 %95, %v38
  %v97 = vpop.permute.xlu0 %96
  %98 = vset.pattern.permute.xlu0 0
  %99 = vperm.xlu0 %98, %v39
  %v100 = vpop.permute.xlu0 %99
  %101 = vset.pattern.permute.xlu0 0
  %102 = vperm.xlu0 %101, %v40
  %v103 = vpop.permute.xlu0 %102
  %104 = vset.pattern.permute.xlu0 0
  %105 = vperm.xlu0 %104, %v41
  %v106 = vpop.permute.xlu0 %105
  %107 = vset.pattern.permute.xlu0 0
  %108 = vperm.xlu0 %107, %v42
  %v109 = vpop.permute.xlu0 %108
  %110 = vset.pattern.permute.xlu0 0
  %111 = vperm.xlu0 %110, %v43
  %v112 = vpop.permute.xlu0 %111
  %113 = vset.pattern.permute.xlu0 0
  %114 = vperm.xlu0 %113, %v44
  %v115 = vpop.permute.xlu0 %114
  %116 = vset.pattern.permute.xlu0 0
  %117 = vperm.xlu0 %116, %v45
  %v118 = vpop.permute.xlu0 %117
  %119 = vset.pattern.permute.xlu0 0
  %120 = vperm.xlu0 %119, %v46
  %v121 = vpop.permute.xlu0 %120
  %122 = vset.pattern.permute.xlu0 0
  %123 = vperm.xlu0 %122, %v47
  %v124 = vpop.permute.xlu0 %123
  %125 = vset.pattern.permute.xlu0 0
  %126 = vperm.xlu0 %125, %v48
  %v127 = vpop.permute.xlu0 %126
  %128 = vset.pattern.permute.xlu0 0
  %129 = vperm.xlu0 %128, %v49
  %v130 = vpop.permute.xlu0 %129
  %131 = vset.pattern.permute.xlu0 0
  %132 = vperm.xlu0 %131, %v50
  %v133 = vpop.permute.xlu0 %132
  %134 = vset.pattern.permute.xlu0 0
  %135 = vperm.xlu0 %134, %v51
  %v136 = vpop.permute.xlu0 %135
  %137 = vset.pattern.permute.xlu0 0
  %138 = vperm.xlu0 %137, %v52
  %v139 = vpop.permute.xlu0 %138
  %140 = vset.pattern.permute.xlu0 0
  %141 = vperm.xlu0 %140, %v53
  %v142 = vpop.permute.xlu0 %141
  %143 = vset.pattern.permute.xlu0 0
  %144 = vperm.xlu0 %143, %v54
  %v145 = vpop.permute.xlu0 %144
  %146 = vset.pattern.permute.xlu0 0
  %147 = vperm.xlu0 %146, %v55
  %v148 = vpop.permute.xlu0 %147
  %149 = vset.pattern.permute.xlu0 0
  %150 = vperm.xlu0 %149, %v56
  %v151 = vpop.permute.xlu0 %150
  %152 = vset.pattern.permute.xlu0 0
  %153 = vperm.xlu0 %152, %v57
  %v154 = vpop.permute.xlu0 %153
  %155 = vset.pattern.permute.xlu0 0
  %156 = vperm.xlu0 %155, %v58
  %v157 = vpop.permute.xlu0 %156
  %vm158 = vcmp.eq.s32.totalorder %v64, %v60
  %vm159 = vcmp.eq.s32.totalorder %v67, %v60
  %vm160 = vcmp.eq.s32.totalorder %v70, %v60
  %vm161 = vcmp.eq.s32.totalorder %v73, %v60
  %vm162 = vcmp.eq.s32.totalorder %v76, %v60
  %vm163 = vcmp.eq.s32.totalorder %v79, %v60
  %vm164 = vcmp.eq.s32.totalorder %v82, %v60
  %vm165 = vcmp.eq.s32.totalorder %v85, %v60
  %vm166 = vcmp.eq.s32.totalorder %v88, %v60
  %vm167 = vcmp.eq.s32.totalorder %v91, %v60
  %vm168 = vcmp.eq.s32.totalorder %v94, %v60
  %vm169 = vcmp.eq.s32.totalorder %v97, %v60
  %vm170 = vcmp.eq.s32.totalorder %v100, %v60
  %vm171 = vcmp.eq.s32.totalorder %v103, %v60
  %vm172 = vcmp.eq.s32.totalorder %v106, %v60
  %vm173 = vcmp.eq.s32.totalorder %v109, %v60
  %vm174 = vcmp.eq.s32.totalorder %v112, %v60
  %vm175 = vcmp.eq.s32.totalorder %v115, %v60
  %vm176 = vcmp.eq.s32.totalorder %v118, %v60
  %vm177 = vcmp.eq.s32.totalorder %v121, %v60
  %vm178 = vcmp.eq.s32.totalorder %v124, %v60
  %vm179 = vcmp.eq.s32.totalorder %v127, %v60
  %vm180 = vcmp.eq.s32.totalorder %v130, %v60
  %vm181 = vcmp.eq.s32.totalorder %v133, %v60
  %vm182 = vcmp.eq.s32.totalorder %v136, %v60
  %vm183 = vcmp.eq.s32.totalorder %v139, %v60
  %vm184 = vcmp.eq.s32.totalorder %v142, %v60
  %vm185 = vcmp.eq.s32.totalorder %v145, %v60
  %vm186 = vcmp.eq.s32.totalorder %v148, %v60
  %vm187 = vcmp.eq.s32.totalorder %v151, %v60
  %vm188 = vcmp.eq.s32.totalorder %v154, %v60
  %vm189 = vcmp.eq.s32.totalorder %v157, %v60
  %vm190 = vmor %vm61, %vm158
  %vm191 = vmor %vm61, %vm159
  %vm192 = vmor %vm61, %vm160
  %vm193 = vmor %vm61, %vm161
  %vm194 = vmor %vm61, %vm162
  %vm195 = vmor %vm61, %vm163
  %vm196 = vmor %vm61, %vm164
  %vm197 = vmor %vm61, %vm165
  %vm198 = vmor %vm61, %vm166
  %vm199 = vmor %vm61, %vm167
  %vm200 = vmor %vm61, %vm168
  %vm201 = vmor %vm61, %vm169
  %vm202 = vmor %vm61, %vm170
  %vm203 = vmor %vm61, %vm171
  %vm204 = vmor %vm61, %vm172
  %vm205 = vmor %vm61, %vm173
  %vm206 = vmor %vm61, %vm174
  %vm207 = vmor %vm61, %vm175
  %vm208 = vmor %vm61, %vm176
  %vm209 = vmor %vm61, %vm177
  %vm210 = vmor %vm61, %vm178
  %vm211 = vmor %vm61, %vm179
  %vm212 = vmor %vm61, %vm180
  %vm213 = vmor %vm61, %vm181
  %vm214 = vmor %vm61, %vm182
  %vm215 = vmor %vm61, %vm183
  %vm216 = vmor %vm61, %vm184
  %vm217 = vmor %vm61, %vm185
  %vm218 = vmor %vm61, %vm186
  %vm219 = vmor %vm61, %vm187
  %vm220 = vmor %vm61, %vm188
  %vm221 = vmor %vm61, %vm189
  %v222 = vadd.s32 %v27, 3
  %v223 = vadd.s32 %v28, 3
  %v224 = vadd.s32 %v29, 3
  %v225 = vadd.s32 %v30, 3
  %v226 = vadd.s32 %v31, 3
  %v227 = vadd.s32 %v32, 3
  %v228 = vadd.s32 %v33, 3
  %v229 = vadd.s32 %v34, 3
  %v230 = vadd.s32 %v35, 3
  %v231 = vadd.s32 %v36, 3
  %v232 = vadd.s32 %v37, 3
  %v233 = vadd.s32 %v38, 3
  %v234 = vadd.s32 %v39, 3
  %v235 = vadd.s32 %v40, 3
  %v236 = vadd.s32 %v41, 3
  %v237 = vadd.s32 %v42, 3
  %v238 = vadd.s32 %v43, 3
  %v239 = vadd.s32 %v44, 3
  %v240 = vadd.s32 %v45, 3
  %v241 = vadd.s32 %v46, 3
  %v242 = vadd.s32 %v47, 3
  %v243 = vadd.s32 %v48, 3
  %v244 = vadd.s32 %v49, 3
  %v245 = vadd.s32 %v50, 3
  %v246 = vadd.s32 %v51, 3
  %v247 = vadd.s32 %v52, 3
  %v248 = vadd.s32 %v53, 3
  %v249 = vadd.s32 %v54, 3
  %v250 = vadd.s32 %v55, 3
  %v251 = vadd.s32 %v56, 3
  %v252 = vadd.s32 %v57, 3
  %v253 = vadd.s32 %v58, 3
  %254 = vset.pattern.permute.xlu0 1
  %255 = vperm.xlu0 %254, %v222
  %v256 = vpop.permute.xlu0 %255
  %257 = vset.pattern.permute.xlu0 1
  %258 = vperm.xlu0 %257, %v223
  %v259 = vpop.permute.xlu0 %258
  %260 = vset.pattern.permute.xlu0 1
  %261 = vperm.xlu0 %260, %v224
  %v262 = vpop.permute.xlu0 %261
  %263 = vset.pattern.permute.xlu0 1
  %264 = vperm.xlu0 %263, %v225
  %v265 = vpop.permute.xlu0 %264
  %266 = vset.pattern.permute.xlu0 1
  %267 = vperm.xlu0 %266, %v226
  %v268 = vpop.permute.xlu0 %267
  %269 = vset.pattern.permute.xlu0 1
  %270 = vperm.xlu0 %269, %v227
  %v271 = vpop.permute.xlu0 %270
  %272 = vset.pattern.permute.xlu0 1
  %273 = vperm.xlu0 %272, %v228
  %v274 = vpop.permute.xlu0 %273
  %275 = vset.pattern.permute.xlu0 1
  %276 = vperm.xlu0 %275, %v229
  %v277 = vpop.permute.xlu0 %276
  %278 = vset.pattern.permute.xlu0 1
  %279 = vperm.xlu0 %278, %v230
  %v280 = vpop.permute.xlu0 %279
  %281 = vset.pattern.permute.xlu0 1
  %282 = vperm.xlu0 %281, %v231
  %v283 = vpop.permute.xlu0 %282
  %284 = vset.pattern.permute.xlu0 1
  %285 = vperm.xlu0 %284, %v232
  %v286 = vpop.permute.xlu0 %285
  %287 = vset.pattern.permute.xlu0 1
  %288 = vperm.xlu0 %287, %v233
  %v289 = vpop.permute.xlu0 %288
  %290 = vset.pattern.permute.xlu0 1
  %291 = vperm.xlu0 %290, %v234
  %v292 = vpop.permute.xlu0 %291
  %293 = vset.pattern.permute.xlu0 1
  %294 = vperm.xlu0 %293, %v235
  %v295 = vpop.permute.xlu0 %294
  %296 = vset.pattern.permute.xlu0 1
  %297 = vperm.xlu0 %296, %v236
  %v298 = vpop.permute.xlu0 %297
  %299 = vset.pattern.permute.xlu0 1
  %300 = vperm.xlu0 %299, %v237
  %v301 = vpop.permute.xlu0 %300
  %302 = vset.pattern.permute.xlu0 1
  %303 = vperm.xlu0 %302, %v238
  %v304 = vpop.permute.xlu0 %303
  %305 = vset.pattern.permute.xlu0 1
  %306 = vperm.xlu0 %305, %v239
  %v307 = vpop.permute.xlu0 %306
  %308 = vset.pattern.permute.xlu0 1
  %309 = vperm.xlu0 %308, %v240
  %v310 = vpop.permute.xlu0 %309
  %311 = vset.pattern.permute.xlu0 1
  %312 = vperm.xlu0 %311, %v241
  %v313 = vpop.permute.xlu0 %312
  %314 = vset.pattern.permute.xlu0 1
  %315 = vperm.xlu0 %314, %v242
  %v316 = vpop.permute.xlu0 %315
  %317 = vset.pattern.permute.xlu0 1
  %318 = vperm.xlu0 %317, %v243
  %v319 = vpop.permute.xlu0 %318
  %320 = vset.pattern.permute.xlu0 1
  %321 = vperm.xlu0 %320, %v244
  %v322 = vpop.permute.xlu0 %321
  %323 = vset.pattern.permute.xlu0 1
  %324 = vperm.xlu0 %323, %v245
  %v325 = vpop.permute.xlu0 %324
  %326 = vset.pattern.permute.xlu0 1
  %327 = vperm.xlu0 %326, %v246
  %v328 = vpop.permute.xlu0 %327
  %329 = vset.pattern.permute.xlu0 1
  %330 = vperm.xlu0 %329, %v247
  %v331 = vpop.permute.xlu0 %330
  %332 = vset.pattern.permute.xlu0 1
  %333 = vperm.xlu0 %332, %v248
  %v334 = vpop.permute.xlu0 %333
  %335 = vset.pattern.permute.xlu0 1
  %336 = vperm.xlu0 %335, %v249
  %v337 = vpop.permute.xlu0 %336
  %338 = vset.pattern.permute.xlu0 1
  %339 = vperm.xlu0 %338, %v250
  %v340 = vpop.permute.xlu0 %339
  %341 = vset.pattern.permute.xlu0 1
  %342 = vperm.xlu0 %341, %v251
  %v343 = vpop.permute.xlu0 %342
  %344 = vset.pattern.permute.xlu0 1
  %345 = vperm.xlu0 %344, %v252
  %v346 = vpop.permute.xlu0 %345
  %347 = vset.pattern.permute.xlu0 1
  %348 = vperm.xlu0 %347, %v253
  %v349 = vpop.permute.xlu0 %348
  %vm350 = vcmp.eq.s32.totalorder %v256, %v60
  %vm351 = vcmp.eq.s32.totalorder %v259, %v60
  %vm352 = vcmp.eq.s32.totalorder %v262, %v60
  %vm353 = vcmp.eq.s32.totalorder %v265, %v60
  %vm354 = vcmp.eq.s32.totalorder %v268, %v60
  %vm355 = vcmp.eq.s32.totalorder %v271, %v60
  %vm356 = vcmp.eq.s32.totalorder %v274, %v60
  %vm357 = vcmp.eq.s32.totalorder %v277, %v60
  %vm358 = vcmp.eq.s32.totalorder %v280, %v60
  %vm359 = vcmp.eq.s32.totalorder %v283, %v60
  %vm360 = vcmp.eq.s32.totalorder %v286, %v60
  %vm361 = vcmp.eq.s32.totalorder %v289, %v60
  %vm362 = vcmp.eq.s32.totalorder %v292, %v60
  %vm363 = vcmp.eq.s32.totalorder %v295, %v60
  %vm364 = vcmp.eq.s32.totalorder %v298, %v60
  %vm365 = vcmp.eq.s32.totalorder %v301, %v60
  %vm366 = vcmp.eq.s32.totalorder %v304, %v60
  %vm367 = vcmp.eq.s32.totalorder %v307, %v60
  %vm368 = vcmp.eq.s32.totalorder %v310, %v60
  %vm369 = vcmp.eq.s32.totalorder %v313, %v60
  %vm370 = vcmp.eq.s32.totalorder %v316, %v60
  %vm371 = vcmp.eq.s32.totalorder %v319, %v60
  %vm372 = vcmp.eq.s32.totalorder %v322, %v60
  %vm373 = vcmp.eq.s32.totalorder %v325, %v60
  %vm374 = vcmp.eq.s32.totalorder %v328, %v60
  %vm375 = vcmp.eq.s32.totalorder %v331, %v60
  %vm376 = vcmp.eq.s32.totalorder %v334, %v60
  %vm377 = vcmp.eq.s32.totalorder %v337, %v60
  %vm378 = vcmp.eq.s32.totalorder %v340, %v60
  %vm379 = vcmp.eq.s32.totalorder %v343, %v60
  %vm380 = vcmp.eq.s32.totalorder %v346, %v60
  %vm381 = vcmp.eq.s32.totalorder %v349, %v60
  %vm382 = vmor %vm190, %vm350
  %vm383 = vmor %vm191, %vm351
  %vm384 = vmor %vm192, %vm352
  %vm385 = vmor %vm193, %vm353
  %vm386 = vmor %vm194, %vm354
  %vm387 = vmor %vm195, %vm355
  %vm388 = vmor %vm196, %vm356
  %vm389 = vmor %vm197, %vm357
  %vm390 = vmor %vm198, %vm358
  %vm391 = vmor %vm199, %vm359
  %vm392 = vmor %vm200, %vm360
  %vm393 = vmor %vm201, %vm361
  %vm394 = vmor %vm202, %vm362
  %vm395 = vmor %vm203, %vm363
  %vm396 = vmor %vm204, %vm364
  %vm397 = vmor %vm205, %vm365
  %vm398 = vmor %vm206, %vm366
  %vm399 = vmor %vm207, %vm367
  %vm400 = vmor %vm208, %vm368
  %vm401 = vmor %vm209, %vm369
  %vm402 = vmor %vm210, %vm370
  %vm403 = vmor %vm211, %vm371
  %vm404 = vmor %vm212, %vm372
  %vm405 = vmor %vm213, %vm373
  %vm406 = vmor %vm214, %vm374
  %vm407 = vmor %vm215, %vm375
  %vm408 = vmor %vm216, %vm376
  %vm409 = vmor %vm217, %vm377
  %vm410 = vmor %vm218, %vm378
  %vm411 = vmor %vm219, %vm379
  %vm412 = vmor %vm220, %vm380
  %vm413 = vmor %vm221, %vm381
  %v414 = vld [vmem:[%s0] sm:$0xff]
  %v415 = vld [vmem:[%s0 + $0x8] sm:$0xff]
  %v416 = vld [vmem:[%s0 + $0x10] sm:$0xff]
  %v417 = vld [vmem:[%s0 + $0x18] sm:$0xff]
  %v418 = vld [vmem:[%s0 + $0x20] sm:$0xff]
  %v419 = vld [vmem:[%s0 + $0x28] sm:$0xff]
  %v420 = vld [vmem:[%s0 + $0x30] sm:$0xff]
  %v421 = vld [vmem:[%s0 + $0x38] sm:$0xff]
  %v422 = vld [vmem:[%s0 + $0x40] sm:$0xff]
  %v423 = vld [vmem:[%s0 + $0x48] sm:$0xff]
  %v424 = vld [vmem:[%s0 + $0x50] sm:$0xff]
  %v425 = vld [vmem:[%s0 + $0x58] sm:$0xff]
  %v426 = vld [vmem:[%s0 + $0x60] sm:$0xff]
  %v427 = vld [vmem:[%s0 + $0x68] sm:$0xff]
  %v428 = vld [vmem:[%s0 + $0x70] sm:$0xff]
  %v429 = vld [vmem:[%s0 + $0x78] sm:$0xff]
  %v430 = vld [vmem:[%s0 + $0x80] sm:$0xff]
  %v431 = vld [vmem:[%s0 + $0x88] sm:$0xff]
  %v432 = vld [vmem:[%s0 + $0x90] sm:$0xff]
  %v433 = vld [vmem:[%s0 + $0x98] sm:$0xff]
  %v434 = vld [vmem:[%s0 + $0xa0] sm:$0xff]
  %v435 = vld [vmem:[%s0 + $0xa8] sm:$0xff]
  %v436 = vld [vmem:[%s0 + $0xb0] sm:$0xff]
  %v437 = vld [vmem:[%s0 + $0xb8] sm:$0xff]
  %v438 = vld [vmem:[%s0 + $0xc0] sm:$0xff]
  %v439 = vld [vmem:[%s0 + $0xc8] sm:$0xff]
  %v440 = vld [vmem:[%s0 + $0xd0] sm:$0xff]
  %v441 = vld [vmem:[%s0 + $0xd8] sm:$0xff]
  %v442 = vld [vmem:[%s0 + $0xe0] sm:$0xff]
  %v443 = vld [vmem:[%s0 + $0xe8] sm:$0xff]
  %v444 = vld [vmem:[%s0 + $0xf0] sm:$0xff]
  %v445 = vld [vmem:[%s0 + $0xf8] sm:$0xff]
  %v446 = vsel %vm382, 1, 0
  %v447 = vsel %vm383, 1, 0
  %v448 = vsel %vm384, 1, 0
  %v449 = vsel %vm385, 1, 0
  %v450 = vsel %vm386, 1, 0
  %v451 = vsel %vm387, 1, 0
  %v452 = vsel %vm388, 1, 0
  %v453 = vsel %vm389, 1, 0
  %v454 = vsel %vm390, 1, 0
  %v455 = vsel %vm391, 1, 0
  %v456 = vsel %vm392, 1, 0
  %v457 = vsel %vm393, 1, 0
  %v458 = vsel %vm394, 1, 0
  %v459 = vsel %vm395, 1, 0
  %v460 = vsel %vm396, 1, 0
  %v461 = vsel %vm397, 1, 0
  %v462 = vsel %vm398, 1, 0
  %v463 = vsel %vm399, 1, 0
  %v464 = vsel %vm400, 1, 0
  %v465 = vsel %vm401, 1, 0
  %v466 = vsel %vm402, 1, 0
  %v467 = vsel %vm403, 1, 0
  %v468 = vsel %vm404, 1, 0
  %v469 = vsel %vm405, 1, 0
  %v470 = vsel %vm406, 1, 0
  %v471 = vsel %vm407, 1, 0
  %v472 = vsel %vm408, 1, 0
  %v473 = vsel %vm409, 1, 0
  %v474 = vsel %vm410, 1, 0
  %v475 = vsel %vm411, 1, 0
  %v476 = vsel %vm412, 1, 0
  %v477 = vsel %vm413, 1, 0
  %v478 = vcvt.s32.f32 %v446
  %v479 = vcvt.s32.f32 %v447
  %v480 = vcvt.s32.f32 %v448
  %v481 = vcvt.s32.f32 %v449
  %v482 = vcvt.s32.f32 %v450
  %v483 = vcvt.s32.f32 %v451
  %v484 = vcvt.s32.f32 %v452
  %v485 = vcvt.s32.f32 %v453
  %v486 = vcvt.s32.f32 %v454
  %v487 = vcvt.s32.f32 %v455
  %v488 = vcvt.s32.f32 %v456
  %v489 = vcvt.s32.f32 %v457
  %v490 = vcvt.s32.f32 %v458
  %v491 = vcvt.s32.f32 %v459
  %v492 = vcvt.s32.f32 %v460
  %v493 = vcvt.s32.f32 %v461
  %v494 = vcvt.s32.f32 %v462
  %v495 = vcvt.s32.f32 %v463
  %v496 = vcvt.s32.f32 %v464
  %v497 = vcvt.s32.f32 %v465
  %v498 = vcvt.s32.f32 %v466
  %v499 = vcvt.s32.f32 %v467
  %v500 = vcvt.s32.f32 %v468
  %v501 = vcvt.s32.f32 %v469
  %v502 = vcvt.s32.f32 %v470
  %v503 = vcvt.s32.f32 %v471
  %v504 = vcvt.s32.f32 %v472
  %v505 = vcvt.s32.f32 %v473
  %v506 = vcvt.s32.f32 %v474
  %v507 = vcvt.s32.f32 %v475
  %v508 = vcvt.s32.f32 %v476
  %v509 = vcvt.s32.f32 %v477
  %542 = vrot.lane.b32.xlu0 %v478, 4
  %v543 = vpop.permute.xlu0 %542
  %544 = vrot.lane.b32.xlu0 %v479, 4
  %v545 = vpop.permute.xlu0 %544
  %546 = vrot.lane.b32.xlu0 %v480, 4
  %v547 = vpop.permute.xlu0 %546
  %548 = vrot.lane.b32.xlu0 %v481, 4
  %v549 = vpop.permute.xlu0 %548
  %550 = vrot.lane.b32.xlu0 %v482, 4
  %v551 = vpop.permute.xlu0 %550
  %552 = vrot.lane.b32.xlu0 %v483, 4
  %v553 = vpop.permute.xlu0 %552
  %554 = vrot.lane.b32.xlu0 %v484, 4
  %v555 = vpop.permute.xlu0 %554
  %556 = vrot.lane.b32.xlu0 %v485, 4
  %v557 = vpop.permute.xlu0 %556
  %558 = vrot.lane.b32.xlu0 %v486, 4
  %v559 = vpop.permute.xlu0 %558
  %560 = vrot.lane.b32.xlu0 %v487, 4
  %v561 = vpop.permute.xlu0 %560
  %562 = vrot.lane.b32.xlu0 %v488, 4
  %v563 = vpop.permute.xlu0 %562
  %564 = vrot.lane.b32.xlu0 %v489, 4
  %v565 = vpop.permute.xlu0 %564
  %566 = vrot.lane.b32.xlu0 %v490, 4
  %v567 = vpop.permute.xlu0 %566
  %568 = vrot.lane.b32.xlu0 %v491, 4
  %v569 = vpop.permute.xlu0 %568
  %570 = vrot.lane.b32.xlu0 %v492, 4
  %v571 = vpop.permute.xlu0 %570
  %572 = vrot.lane.b32.xlu0 %v493, 4
  %v573 = vpop.permute.xlu0 %572
  %574 = vrot.lane.b32.xlu0 %v494, 4
  %v575 = vpop.permute.xlu0 %574
  %576 = vrot.lane.b32.xlu0 %v495, 4
  %v577 = vpop.permute.xlu0 %576
  %578 = vrot.lane.b32.xlu0 %v496, 4
  %v579 = vpop.permute.xlu0 %578
  %580 = vrot.lane.b32.xlu0 %v497, 4
  %v581 = vpop.permute.xlu0 %580
  %582 = vrot.lane.b32.xlu0 %v498, 4
  %v583 = vpop.permute.xlu0 %582
  %584 = vrot.lane.b32.xlu0 %v499, 4
  %v585 = vpop.permute.xlu0 %584
  %586 = vrot.lane.b32.xlu0 %v500, 4
  %v587 = vpop.permute.xlu0 %586
  %588 = vrot.lane.b32.xlu0 %v501, 4
  %v589 = vpop.permute.xlu0 %588
  %590 = vrot.lane.b32.xlu0 %v502, 4
  %v591 = vpop.permute.xlu0 %590
  %592 = vrot.lane.b32.xlu0 %v503, 4
  %v593 = vpop.permute.xlu0 %592
  %594 = vrot.lane.b32.xlu0 %v504, 4
  %v595 = vpop.permute.xlu0 %594
  %596 = vrot.lane.b32.xlu0 %v505, 4
  %v597 = vpop.permute.xlu0 %596
  %598 = vrot.lane.b32.xlu0 %v506, 4
  %v599 = vpop.permute.xlu0 %598
  %600 = vrot.lane.b32.xlu0 %v507, 4
  %v601 = vpop.permute.xlu0 %600
  %602 = vrot.lane.b32.xlu0 %v508, 4
  %v603 = vpop.permute.xlu0 %602
  %604 = vrot.lane.b32.xlu0 %v509, 4
  %v605 = vpop.permute.xlu0 %604
  %vm638 = vcmask 31744
  %v639 = vsel %vm638, %v414, %v543
  %v640 = vsel %vm638, %v415, %v545
  %v641 = vsel %vm638, %v416, %v547
  %v642 = vsel %vm638, %v417, %v549
  %v643 = vsel %vm638, %v418, %v551
  %v644 = vsel %vm638, %v419, %v553
  %v645 = vsel %vm638, %v420, %v555
  %v646 = vsel %vm638, %v421, %v557
  %v647 = vsel %vm638, %v422, %v559
  %v648 = vsel %vm638, %v423, %v561
  %v649 = vsel %vm638, %v424, %v563
  %v650 = vsel %vm638, %v425, %v565
  %v651 = vsel %vm638, %v426, %v567
  %v652 = vsel %vm638, %v427, %v569
  %v653 = vsel %vm638, %v428, %v571
  %v654 = vsel %vm638, %v429, %v573
  %v655 = vsel %vm638, %v430, %v575
  %v656 = vsel %vm638, %v431, %v577
  %v657 = vsel %vm638, %v432, %v579
  %v658 = vsel %vm638, %v433, %v581
  %v659 = vsel %vm638, %v434, %v583
  %v660 = vsel %vm638, %v435, %v585
  %v661 = vsel %vm638, %v436, %v587
  %v662 = vsel %vm638, %v437, %v589
  %v663 = vsel %vm638, %v438, %v591
  %v664 = vsel %vm638, %v439, %v593
  %v665 = vsel %vm638, %v440, %v595
  %v666 = vsel %vm638, %v441, %v597
  %v667 = vsel %vm638, %v442, %v599
  %v668 = vsel %vm638, %v443, %v601
  %v669 = vsel %vm638, %v444, %v603
  %v670 = vsel %vm638, %v445, %v605
  %v671 = vpack.c.bf16 %v640, %v639
  %v672 = vpack.c.bf16 %v642, %v641
  %v673 = vpack.c.bf16 %v644, %v643
  %v674 = vpack.c.bf16 %v646, %v645
  %v675 = vpack.c.bf16 %v648, %v647
  %v676 = vpack.c.bf16 %v650, %v649
  %v677 = vpack.c.bf16 %v652, %v651
  %v678 = vpack.c.bf16 %v654, %v653
  %v679 = vpack.c.bf16 %v656, %v655
  %v680 = vpack.c.bf16 %v658, %v657
  %v681 = vpack.c.bf16 %v660, %v659
  %v682 = vpack.c.bf16 %v662, %v661
  %v683 = vpack.c.bf16 %v664, %v663
  %v684 = vpack.c.bf16 %v666, %v665
  %v685 = vpack.c.bf16 %v668, %v667
  %v686 = vpack.c.bf16 %v670, %v669
  %v687 = vld [vmem:[%s6] sm:$0x1]
  %v688 = vld [vmem:[%s6 + $0x1] sm:$0x1]
  %v689 = vld [vmem:[%s6 + $0x2] sm:$0x1]
  %v690 = vld [vmem:[%s2] sm:$0xf]
  %v691 = vld [vmem:[%s2 + $0x4] sm:$0xf]
  %v694 = vunpack.c.l.b16 %v690
  %v695 = vunpack.c.l.b16 %v691
  %v696 = vpack.c.b16 %v695, %v694
  %vm698 = vcmask 130048
  %v700 = vsel %vm698, %v671, 0
  %v703 = vsel %vm698, %v672, 0
  %v706 = vsel %vm698, %v673, 0
  %v709 = vsel %vm698, %v674, 0
  %v712 = vsel %vm698, %v675, 0
  %v715 = vsel %vm698, %v676, 0
  %v718 = vsel %vm698, %v677, 0
  %v721 = vsel %vm698, %v678, 0
  %v724 = vsel %vm698, %v679, 0
  %v727 = vsel %vm698, %v680, 0
  %v730 = vsel %vm698, %v681, 0
  %v733 = vsel %vm698, %v682, 0
  %v736 = vsel %vm698, %v683, 0
  %v739 = vsel %vm698, %v684, 0
  %v742 = vsel %vm698, %v685, 0
  %v745 = vsel %vm698, %v686, 0
  %747 = vmatpush.bf16.msra.mxu0 0
  %748 = vmatpush.bf16.msra.mxu0 0
  %749 = vmatpush.bf16.msra.mxu0 0
  %750 = vmatpush.bf16.msra.mxu0 0
  %751 = vmatpush.bf16.msra.mxu0 0
  %752 = vmatpush.bf16.msra.mxu0 0
  %753 = vmatpush.bf16.msra.mxu0 0
  %754 = vmatpush.bf16.msra.mxu0 %v696
  %755 = vmatmul.bf16.gmra.mxu0 %v700
  %v756 = vpop.f32.mrf.mxu0
  %v757 = vadd.f32 0.0, %v756
  %v758 = vpop.f32.mrf.mxu0
  %v759 = vadd.f32 0.0, %v758
  %760 = vmatmul.bf16.gmra.mxu0 %v703
  %v761 = vpop.f32.mrf.mxu0
  %v762 = vadd.f32 0.0, %v761
  %v763 = vpop.f32.mrf.mxu0
  %v764 = vadd.f32 0.0, %v763
  %765 = vmatmul.bf16.gmra.mxu0 %v706
  %v766 = vpop.f32.mrf.mxu0
  %v767 = vadd.f32 0.0, %v766
  %v768 = vpop.f32.mrf.mxu0
  %v769 = vadd.f32 0.0, %v768
  %770 = vmatmul.bf16.gmra.mxu0 %v709
  %v771 = vpop.f32.mrf.mxu0
  %v772 = vadd.f32 0.0, %v771
  %v773 = vpop.f32.mrf.mxu0
  %v774 = vadd.f32 0.0, %v773
  %775 = vmatmul.bf16.gmra.mxu0 %v712
  %v776 = vpop.f32.mrf.mxu0
  %v777 = vadd.f32 0.0, %v776
  %v778 = vpop.f32.mrf.mxu0
  %v779 = vadd.f32 0.0, %v778
  %780 = vmatmul.bf16.gmra.mxu0 %v715
  %v781 = vpop.f32.mrf.mxu0
  %v782 = vadd.f32 0.0, %v781
  %v783 = vpop.f32.mrf.mxu0
  %v784 = vadd.f32 0.0, %v783
  %785 = vmatmul.bf16.gmra.mxu0 %v718
  %v786 = vpop.f32.mrf.mxu0
  %v787 = vadd.f32 0.0, %v786
  %v788 = vpop.f32.mrf.mxu0
  %v789 = vadd.f32 0.0, %v788
  %790 = vmatmul.bf16.gmra.mxu0 %v721
  %v791 = vpop.f32.mrf.mxu0
  %v792 = vadd.f32 0.0, %v791
  %v793 = vpop.f32.mrf.mxu0
  %v794 = vadd.f32 0.0, %v793
  %795 = vmatmul.bf16.gmra.mxu0 %v724
  %v796 = vpop.f32.mrf.mxu0
  %v797 = vadd.f32 0.0, %v796
  %v798 = vpop.f32.mrf.mxu0
  %v799 = vadd.f32 0.0, %v798
  %800 = vmatmul.bf16.gmra.mxu0 %v727
  %v801 = vpop.f32.mrf.mxu0
  %v802 = vadd.f32 0.0, %v801
  %v803 = vpop.f32.mrf.mxu0
  %v804 = vadd.f32 0.0, %v803
  %805 = vmatmul.bf16.gmra.mxu0 %v730
  %v806 = vpop.f32.mrf.mxu0
  %v807 = vadd.f32 0.0, %v806
  %v808 = vpop.f32.mrf.mxu0
  %v809 = vadd.f32 0.0, %v808
  %810 = vmatmul.bf16.gmra.mxu0 %v733
  %v811 = vpop.f32.mrf.mxu0
  %v812 = vadd.f32 0.0, %v811
  %v813 = vpop.f32.mrf.mxu0
  %v814 = vadd.f32 0.0, %v813
  %815 = vmatmul.bf16.gmra.mxu0 %v736
  %v816 = vpop.f32.mrf.mxu0
  %v817 = vadd.f32 0.0, %v816
  %v818 = vpop.f32.mrf.mxu0
  %v819 = vadd.f32 0.0, %v818
  %820 = vmatmul.bf16.gmra.mxu0 %v739
  %v821 = vpop.f32.mrf.mxu0
  %v822 = vadd.f32 0.0, %v821
  %v823 = vpop.f32.mrf.mxu0
  %v824 = vadd.f32 0.0, %v823
  %825 = vmatmul.bf16.gmra.mxu0 %v742
  %v826 = vpop.f32.mrf.mxu0
  %v827 = vadd.f32 0.0, %v826
  %v828 = vpop.f32.mrf.mxu0
  %v829 = vadd.f32 0.0, %v828
  %830 = vmatmul.bf16.gmra.mxu0 %v745
  %v831 = vpop.f32.mrf.mxu0
  %v832 = vadd.f32 0.0, %v831
  %v833 = vpop.f32.mrf.mxu0
  %v834 = vadd.f32 0.0, %v833
  %835 = vdwg.mxu0
  %v836 = vmax.f32 %v757, 0.0
  %v837 = vmax.f32 %v759, 0.0
  %v838 = vmax.f32 %v762, 0.0
  %v839 = vmax.f32 %v764, 0.0
  %v840 = vmax.f32 %v767, 0.0
  %v841 = vmax.f32 %v769, 0.0
  %v842 = vmax.f32 %v772, 0.0
  %v843 = vmax.f32 %v774, 0.0
  %v844 = vmax.f32 %v777, 0.0
  %v845 = vmax.f32 %v779, 0.0
  %v846 = vmax.f32 %v782, 0.0
  %v847 = vmax.f32 %v784, 0.0
  %v848 = vmax.f32 %v787, 0.0
  %v849 = vmax.f32 %v789, 0.0
  %v850 = vmax.f32 %v792, 0.0
  %v851 = vmax.f32 %v794, 0.0
  %v852 = vmax.f32 %v797, 0.0
  %v853 = vmax.f32 %v799, 0.0
  %v854 = vmax.f32 %v802, 0.0
  %v855 = vmax.f32 %v804, 0.0
  %v856 = vmax.f32 %v807, 0.0
  %v857 = vmax.f32 %v809, 0.0
  %v858 = vmax.f32 %v812, 0.0
  %v859 = vmax.f32 %v814, 0.0
  %v860 = vmax.f32 %v817, 0.0
  %v861 = vmax.f32 %v819, 0.0
  %v862 = vmax.f32 %v822, 0.0
  %v863 = vmax.f32 %v824, 0.0
  %v864 = vmax.f32 %v827, 0.0
  %v865 = vmax.f32 %v829, 0.0
  %v866 = vmax.f32 %v832, 0.0
  %v867 = vmax.f32 %v834, 0.0
  %v868 = vpack.c.bf16 %v837, %v836
  %v869 = vpack.c.bf16 %v839, %v838
  %v870 = vpack.c.bf16 %v841, %v840
  %v871 = vpack.c.bf16 %v843, %v842
  %v872 = vpack.c.bf16 %v845, %v844
  %v873 = vpack.c.bf16 %v847, %v846
  %v874 = vpack.c.bf16 %v849, %v848
  %v875 = vpack.c.bf16 %v851, %v850
  %v876 = vpack.c.bf16 %v853, %v852
  %v877 = vpack.c.bf16 %v855, %v854
  %v878 = vpack.c.bf16 %v857, %v856
  %v879 = vpack.c.bf16 %v859, %v858
  %v880 = vpack.c.bf16 %v861, %v860
  %v881 = vpack.c.bf16 %v863, %v862
  %v882 = vpack.c.bf16 %v865, %v864
  %v883 = vpack.c.bf16 %v867, %v866
  %v884 = vld [vmem:[%s3] sm:$0xf]
  %v885 = vld [vmem:[%s3 + $0x4] sm:$0xf]
  %v886 = vld [vmem:[%s3 + $0x8] sm:$0xf]
  %v887 = vld [vmem:[%s3 + $0xc] sm:$0xf]
  %v888 = vld [vmem:[%s3 + $0x10] sm:$0xf]
  %v889 = vld [vmem:[%s3 + $0x14] sm:$0xf]
  %v890 = vld [vmem:[%s3 + $0x18] sm:$0xf]
  %v891 = vld [vmem:[%s3 + $0x1c] sm:$0xf]
  %v893 = vperm.slane %v687, 0
  %v903 = vunpack.c.l.b16 %v884
  %v904 = vunpack.c.l.b16 %v885
  %v905 = vunpack.c.l.b16 %v886
  %v906 = vunpack.c.l.b16 %v887
  %v907 = vunpack.c.l.b16 %v888
  %v908 = vunpack.c.l.b16 %v889
  %v909 = vunpack.c.l.b16 %v890
  %v910 = vunpack.c.l.b16 %v891
  %v911 = vpack.c.b16 %v904, %v903
  %v912 = vpack.c.b16 %v906, %v905
  %v913 = vpack.c.b16 %v908, %v907
  %v914 = vpack.c.b16 %v910, %v909
  %vm919 = vcmask 523264
  %v921 = vsel %vm919, %v868, 0
  %v924 = vsel %vm919, %v869, 0
  %v927 = vsel %vm919, %v870, 0
  %v930 = vsel %vm919, %v871, 0
  %v933 = vsel %vm919, %v872, 0
  %v936 = vsel %vm919, %v873, 0
  %v939 = vsel %vm919, %v874, 0
  %v942 = vsel %vm919, %v875, 0
  %v945 = vsel %vm919, %v876, 0
  %v948 = vsel %vm919, %v877, 0
  %v951 = vsel %vm919, %v878, 0
  %v954 = vsel %vm919, %v879, 0
  %v957 = vsel %vm919, %v880, 0
  %v960 = vsel %vm919, %v881, 0
  %v963 = vsel %vm919, %v882, 0
  %v966 = vsel %vm919, %v883, 0
  %968 = vmatpush.bf16.msra.mxu0 0
  %969 = vmatpush.bf16.msra.mxu0 0
  %970 = vmatpush.bf16.msra.mxu0 0
  %971 = vmatpush.bf16.msra.mxu0 0
  %972 = vmatpush.bf16.msra.mxu0 %v914
  %973 = vmatpush.bf16.msra.mxu0 %v913
  %974 = vmatpush.bf16.msra.mxu0 %v912
  %975 = vmatpush.bf16.msra.mxu0 %v911
  %976 = vmatmul.bf16.gmra.mxu0 %v921
  %v977 = vpop.f32.mrf.mxu0
  %v978 = vadd.f32 %v893, %v977
  %v979 = vpop.f32.mrf.mxu0
  %v980 = vadd.f32 %v893, %v979
  %981 = vmatmul.bf16.gmra.mxu0 %v924
  %v982 = vpop.f32.mrf.mxu0
  %v983 = vadd.f32 %v893, %v982
  %v984 = vpop.f32.mrf.mxu0
  %v985 = vadd.f32 %v893, %v984
  %986 = vmatmul.bf16.gmra.mxu0 %v927
  %v987 = vpop.f32.mrf.mxu0
  %v988 = vadd.f32 %v893, %v987
  %v989 = vpop.f32.mrf.mxu0
  %v990 = vadd.f32 %v893, %v989
  %991 = vmatmul.bf16.gmra.mxu0 %v930
  %v992 = vpop.f32.mrf.mxu0
  %v993 = vadd.f32 %v893, %v992
  %v994 = vpop.f32.mrf.mxu0
  %v995 = vadd.f32 %v893, %v994
  %996 = vmatmul.bf16.gmra.mxu0 %v933
  %v997 = vpop.f32.mrf.mxu0
  %v998 = vadd.f32 %v893, %v997
  %v999 = vpop.f32.mrf.mxu0
  %v1000 = vadd.f32 %v893, %v999
  %1001 = vmatmul.bf16.gmra.mxu0 %v936
  %v1002 = vpop.f32.mrf.mxu0
  %v1003 = vadd.f32 %v893, %v1002
  %v1004 = vpop.f32.mrf.mxu0
  %v1005 = vadd.f32 %v893, %v1004
  %1006 = vmatmul.bf16.gmra.mxu0 %v939
  %v1007 = vpop.f32.mrf.mxu0
  %v1008 = vadd.f32 %v893, %v1007
  %v1009 = vpop.f32.mrf.mxu0
  %v1010 = vadd.f32 %v893, %v1009
  %1011 = vmatmul.bf16.gmra.mxu0 %v942
  %v1012 = vpop.f32.mrf.mxu0
  %v1013 = vadd.f32 %v893, %v1012
  %v1014 = vpop.f32.mrf.mxu0
  %v1015 = vadd.f32 %v893, %v1014
  %1016 = vmatmul.bf16.gmra.mxu0 %v945
  %v1017 = vpop.f32.mrf.mxu0
  %v1018 = vadd.f32 %v893, %v1017
  %v1019 = vpop.f32.mrf.mxu0
  %v1020 = vadd.f32 %v893, %v1019
  %1021 = vmatmul.bf16.gmra.mxu0 %v948
  %v1022 = vpop.f32.mrf.mxu0
  %v1023 = vadd.f32 %v893, %v1022
  %v1024 = vpop.f32.mrf.mxu0
  %v1025 = vadd.f32 %v893, %v1024
  %1026 = vmatmul.bf16.gmra.mxu0 %v951
  %v1027 = vpop.f32.mrf.mxu0
  %v1028 = vadd.f32 %v893, %v1027
  %v1029 = vpop.f32.mrf.mxu0
  %v1030 = vadd.f32 %v893, %v1029
  %1031 = vmatmul.bf16.gmra.mxu0 %v954
  %v1032 = vpop.f32.mrf.mxu0
  %v1033 = vadd.f32 %v893, %v1032
  %v1034 = vpop.f32.mrf.mxu0
  %v1035 = vadd.f32 %v893, %v1034
  %1036 = vmatmul.bf16.gmra.mxu0 %v957
  %v1037 = vpop.f32.mrf.mxu0
  %v1038 = vadd.f32 %v893, %v1037
  %v1039 = vpop.f32.mrf.mxu0
  %v1040 = vadd.f32 %v893, %v1039
  %1041 = vmatmul.bf16.gmra.mxu0 %v960
  %v1042 = vpop.f32.mrf.mxu0
  %v1043 = vadd.f32 %v893, %v1042
  %v1044 = vpop.f32.mrf.mxu0
  %v1045 = vadd.f32 %v893, %v1044
  %1046 = vmatmul.bf16.gmra.mxu0 %v963
  %v1047 = vpop.f32.mrf.mxu0
  %v1048 = vadd.f32 %v893, %v1047
  %v1049 = vpop.f32.mrf.mxu0
  %v1050 = vadd.f32 %v893, %v1049
  %1051 = vmatmul.bf16.gmra.mxu0 %v966
  %v1052 = vpop.f32.mrf.mxu0
  %v1053 = vadd.f32 %v893, %v1052
  %v1054 = vpop.f32.mrf.mxu0
  %v1055 = vadd.f32 %v893, %v1054
  %1056 = vdwg.mxu0
  %v1057 = vmax.f32 %v978, 0.0
  %v1058 = vmax.f32 %v980, 0.0
  %v1059 = vmax.f32 %v983, 0.0
  %v1060 = vmax.f32 %v985, 0.0
  %v1061 = vmax.f32 %v988, 0.0
  %v1062 = vmax.f32 %v990, 0.0
  %v1063 = vmax.f32 %v993, 0.0
  %v1064 = vmax.f32 %v995, 0.0
  %v1065 = vmax.f32 %v998, 0.0
  %v1066 = vmax.f32 %v1000, 0.0
  %v1067 = vmax.f32 %v1003, 0.0
  %v1068 = vmax.f32 %v1005, 0.0
  %v1069 = vmax.f32 %v1008, 0.0
  %v1070 = vmax.f32 %v1010, 0.0
  %v1071 = vmax.f32 %v1013, 0.0
  %v1072 = vmax.f32 %v1015, 0.0
  %v1073 = vmax.f32 %v1018, 0.0
  %v1074 = vmax.f32 %v1020, 0.0
  %v1075 = vmax.f32 %v1023, 0.0
  %v1076 = vmax.f32 %v1025, 0.0
  %v1077 = vmax.f32 %v1028, 0.0
  %v1078 = vmax.f32 %v1030, 0.0
  %v1079 = vmax.f32 %v1033, 0.0
  %v1080 = vmax.f32 %v1035, 0.0
  %v1081 = vmax.f32 %v1038, 0.0
  %v1082 = vmax.f32 %v1040, 0.0
  %v1083 = vmax.f32 %v1043, 0.0
  %v1084 = vmax.f32 %v1045, 0.0
  %v1085 = vmax.f32 %v1048, 0.0
  %v1086 = vmax.f32 %v1050, 0.0
  %v1087 = vmax.f32 %v1053, 0.0
  %v1088 = vmax.f32 %v1055, 0.0
  %v1089 = vpack.c.bf16 %v1058, %v1057
  %v1090 = vpack.c.bf16 %v1060, %v1059
  %v1091 = vpack.c.bf16 %v1062, %v1061
  %v1092 = vpack.c.bf16 %v1064, %v1063
  %v1093 = vpack.c.bf16 %v1066, %v1065
  %v1094 = vpack.c.bf16 %v1068, %v1067
  %v1095 = vpack.c.bf16 %v1070, %v1069
  %v1096 = vpack.c.bf16 %v1072, %v1071
  %v1097 = vpack.c.bf16 %v1074, %v1073
  %v1098 = vpack.c.bf16 %v1076, %v1075
  %v1099 = vpack.c.bf16 %v1078, %v1077
  %v1100 = vpack.c.bf16 %v1080, %v1079
  %v1101 = vpack.c.bf16 %v1082, %v1081
  %v1102 = vpack.c.bf16 %v1084, %v1083
  %v1103 = vpack.c.bf16 %v1086, %v1085
  %v1104 = vpack.c.bf16 %v1088, %v1087
  %v1105 = vld [vmem:[%s4] sm:$0xf]
  %v1106 = vld [vmem:[%s4 + $0x4] sm:$0xf]
  %v1107 = vld [vmem:[%s4 + $0x8] sm:$0xf]
  %v1108 = vld [vmem:[%s4 + $0xc] sm:$0xf]
  %v1109 = vld [vmem:[%s4 + $0x10] sm:$0xf]
  %v1110 = vld [vmem:[%s4 + $0x14] sm:$0xf]
  %v1111 = vld [vmem:[%s4 + $0x18] sm:$0xf]
  %v1112 = vld [vmem:[%s4 + $0x1c] sm:$0xf]
  %v1114 = vperm.slane %v688, 0
  %v1124 = vunpack.c.l.b16 %v1105
  %v1125 = vunpack.c.l.b16 %v1106
  %v1126 = vunpack.c.l.b16 %v1107
  %v1127 = vunpack.c.l.b16 %v1108
  %v1128 = vunpack.c.l.b16 %v1109
  %v1129 = vunpack.c.l.b16 %v1110
  %v1130 = vunpack.c.l.b16 %v1111
  %v1131 = vunpack.c.l.b16 %v1112
  %v1132 = vpack.c.b16 %v1125, %v1124
  %v1133 = vpack.c.b16 %v1127, %v1126
  %v1134 = vpack.c.b16 %v1129, %v1128
  %v1135 = vpack.c.b16 %v1131, %v1130
  %v1141 = vsel %vm919, %v1089, 0
  %v1144 = vsel %vm919, %v1090, 0
  %v1147 = vsel %vm919, %v1091, 0
  %v1150 = vsel %vm919, %v1092, 0
  %v1153 = vsel %vm919, %v1093, 0
  %v1156 = vsel %vm919, %v1094, 0
  %v1159 = vsel %vm919, %v1095, 0
  %v1162 = vsel %vm919, %v1096, 0
  %v1165 = vsel %vm919, %v1097, 0
  %v1168 = vsel %vm919, %v1098, 0
  %v1171 = vsel %vm919, %v1099, 0
  %v1174 = vsel %vm919, %v1100, 0
  %v1177 = vsel %vm919, %v1101, 0
  %v1180 = vsel %vm919, %v1102, 0
  %v1183 = vsel %vm919, %v1103, 0
  %v1186 = vsel %vm919, %v1104, 0
  %1188 = vmatpush.bf16.msra.mxu0 0
  %1189 = vmatpush.bf16.msra.mxu0 0
  %1190 = vmatpush.bf16.msra.mxu0 0
  %1191 = vmatpush.bf16.msra.mxu0 0
  %1192 = vmatpush.bf16.msra.mxu0 %v1135
  %1193 = vmatpush.bf16.msra.mxu0 %v1134
  %1194 = vmatpush.bf16.msra.mxu0 %v1133
  %1195 = vmatpush.bf16.msra.mxu0 %v1132
  %1196 = vmatmul.bf16.gmra.mxu0 %v1141
  %v1197 = vpop.f32.mrf.mxu0
  %v1198 = vadd.f32 %v1114, %v1197
  %v1199 = vpop.f32.mrf.mxu0
  %v1200 = vadd.f32 %v1114, %v1199
  %1201 = vmatmul.bf16.gmra.mxu0 %v1144
  %v1202 = vpop.f32.mrf.mxu0
  %v1203 = vadd.f32 %v1114, %v1202
  %v1204 = vpop.f32.mrf.mxu0
  %v1205 = vadd.f32 %v1114, %v1204
  %1206 = vmatmul.bf16.gmra.mxu0 %v1147
  %v1207 = vpop.f32.mrf.mxu0
  %v1208 = vadd.f32 %v1114, %v1207
  %v1209 = vpop.f32.mrf.mxu0
  %v1210 = vadd.f32 %v1114, %v1209
  %1211 = vmatmul.bf16.gmra.mxu0 %v1150
  %v1212 = vpop.f32.mrf.mxu0
  %v1213 = vadd.f32 %v1114, %v1212
  %v1214 = vpop.f32.mrf.mxu0
  %v1215 = vadd.f32 %v1114, %v1214
  %1216 = vmatmul.bf16.gmra.mxu0 %v1153
  %v1217 = vpop.f32.mrf.mxu0
  %v1218 = vadd.f32 %v1114, %v1217
  %v1219 = vpop.f32.mrf.mxu0
  %v1220 = vadd.f32 %v1114, %v1219
  %1221 = vmatmul.bf16.gmra.mxu0 %v1156
  %v1222 = vpop.f32.mrf.mxu0
  %v1223 = vadd.f32 %v1114, %v1222
  %v1224 = vpop.f32.mrf.mxu0
  %v1225 = vadd.f32 %v1114, %v1224
  %1226 = vmatmul.bf16.gmra.mxu0 %v1159
  %v1227 = vpop.f32.mrf.mxu0
  %v1228 = vadd.f32 %v1114, %v1227
  %v1229 = vpop.f32.mrf.mxu0
  %v1230 = vadd.f32 %v1114, %v1229
  %1231 = vmatmul.bf16.gmra.mxu0 %v1162
  %v1232 = vpop.f32.mrf.mxu0
  %v1233 = vadd.f32 %v1114, %v1232
  %v1234 = vpop.f32.mrf.mxu0
  %v1235 = vadd.f32 %v1114, %v1234
  %1236 = vmatmul.bf16.gmra.mxu0 %v1165
  %v1237 = vpop.f32.mrf.mxu0
  %v1238 = vadd.f32 %v1114, %v1237
  %v1239 = vpop.f32.mrf.mxu0
  %v1240 = vadd.f32 %v1114, %v1239
  %1241 = vmatmul.bf16.gmra.mxu0 %v1168
  %v1242 = vpop.f32.mrf.mxu0
  %v1243 = vadd.f32 %v1114, %v1242
  %v1244 = vpop.f32.mrf.mxu0
  %v1245 = vadd.f32 %v1114, %v1244
  %1246 = vmatmul.bf16.gmra.mxu0 %v1171
  %v1247 = vpop.f32.mrf.mxu0
  %v1248 = vadd.f32 %v1114, %v1247
  %v1249 = vpop.f32.mrf.mxu0
  %v1250 = vadd.f32 %v1114, %v1249
  %1251 = vmatmul.bf16.gmra.mxu0 %v1174
  %v1252 = vpop.f32.mrf.mxu0
  %v1253 = vadd.f32 %v1114, %v1252
  %v1254 = vpop.f32.mrf.mxu0
  %v1255 = vadd.f32 %v1114, %v1254
  %1256 = vmatmul.bf16.gmra.mxu0 %v1177
  %v1257 = vpop.f32.mrf.mxu0
  %v1258 = vadd.f32 %v1114, %v1257
  %v1259 = vpop.f32.mrf.mxu0
  %v1260 = vadd.f32 %v1114, %v1259
  %1261 = vmatmul.bf16.gmra.mxu0 %v1180
  %v1262 = vpop.f32.mrf.mxu0
  %v1263 = vadd.f32 %v1114, %v1262
  %v1264 = vpop.f32.mrf.mxu0
  %v1265 = vadd.f32 %v1114, %v1264
  %1266 = vmatmul.bf16.gmra.mxu0 %v1183
  %v1267 = vpop.f32.mrf.mxu0
  %v1268 = vadd.f32 %v1114, %v1267
  %v1269 = vpop.f32.mrf.mxu0
  %v1270 = vadd.f32 %v1114, %v1269
  %1271 = vmatmul.bf16.gmra.mxu0 %v1186
  %v1272 = vpop.f32.mrf.mxu0
  %v1273 = vadd.f32 %v1114, %v1272
  %v1274 = vpop.f32.mrf.mxu0
  %v1275 = vadd.f32 %v1114, %v1274
  %1276 = vdwg.mxu0
  %v1277 = vmax.f32 %v1198, 0.0
  %v1278 = vmax.f32 %v1200, 0.0
  %v1279 = vmax.f32 %v1203, 0.0
  %v1280 = vmax.f32 %v1205, 0.0
  %v1281 = vmax.f32 %v1208, 0.0
  %v1282 = vmax.f32 %v1210, 0.0
  %v1283 = vmax.f32 %v1213, 0.0
  %v1284 = vmax.f32 %v1215, 0.0
  %v1285 = vmax.f32 %v1218, 0.0
  %v1286 = vmax.f32 %v1220, 0.0
  %v1287 = vmax.f32 %v1223, 0.0
  %v1288 = vmax.f32 %v1225, 0.0
  %v1289 = vmax.f32 %v1228, 0.0
  %v1290 = vmax.f32 %v1230, 0.0
  %v1291 = vmax.f32 %v1233, 0.0
  %v1292 = vmax.f32 %v1235, 0.0
  %v1293 = vmax.f32 %v1238, 0.0
  %v1294 = vmax.f32 %v1240, 0.0
  %v1295 = vmax.f32 %v1243, 0.0
  %v1296 = vmax.f32 %v1245, 0.0
  %v1297 = vmax.f32 %v1248, 0.0
  %v1298 = vmax.f32 %v1250, 0.0
  %v1299 = vmax.f32 %v1253, 0.0
  %v1300 = vmax.f32 %v1255, 0.0
  %v1301 = vmax.f32 %v1258, 0.0
  %v1302 = vmax.f32 %v1260, 0.0
  %v1303 = vmax.f32 %v1263, 0.0
  %v1304 = vmax.f32 %v1265, 0.0
  %v1305 = vmax.f32 %v1268, 0.0
  %v1306 = vmax.f32 %v1270, 0.0
  %v1307 = vmax.f32 %v1273, 0.0
  %v1308 = vmax.f32 %v1275, 0.0
  %v1309 = vpack.c.bf16 %v1278, %v1277
  %v1310 = vpack.c.bf16 %v1280, %v1279
  %v1311 = vpack.c.bf16 %v1282, %v1281
  %v1312 = vpack.c.bf16 %v1284, %v1283
  %v1313 = vpack.c.bf16 %v1286, %v1285
  %v1314 = vpack.c.bf16 %v1288, %v1287
  %v1315 = vpack.c.bf16 %v1290, %v1289
  %v1316 = vpack.c.bf16 %v1292, %v1291
  %v1317 = vpack.c.bf16 %v1294, %v1293
  %v1318 = vpack.c.bf16 %v1296, %v1295
  %v1319 = vpack.c.bf16 %v1298, %v1297
  %v1320 = vpack.c.bf16 %v1300, %v1299
  %v1321 = vpack.c.bf16 %v1302, %v1301
  %v1322 = vpack.c.bf16 %v1304, %v1303
  %v1323 = vpack.c.bf16 %v1306, %v1305
  %v1324 = vpack.c.bf16 %v1308, %v1307
  %v1325 = vld [vmem:[%s5] sm:$0xf]
  %v1326 = vld [vmem:[%s5 + $0x4] sm:$0xf]
  %v1327 = vld [vmem:[%s5 + $0x8] sm:$0xf]
  %v1328 = vld [vmem:[%s5 + $0xc] sm:$0xf]
  %v1329 = vld [vmem:[%s5 + $0x10] sm:$0xf]
  %v1330 = vld [vmem:[%s5 + $0x14] sm:$0xf]
  %v1331 = vld [vmem:[%s5 + $0x18] sm:$0xf]
  %v1332 = vld [vmem:[%s5 + $0x1c] sm:$0xf]
  %v1333 = vld [vmem:[%s5 + $0x20] sm:$0xf]
  %v1334 = vld [vmem:[%s5 + $0x24] sm:$0xf]
  %v1335 = vld [vmem:[%s5 + $0x28] sm:$0xf]
  %v1336 = vld [vmem:[%s5 + $0x2c] sm:$0xf]
  %v1337 = vld [vmem:[%s5 + $0x30] sm:$0xf]
  %v1338 = vld [vmem:[%s5 + $0x34] sm:$0xf]
  %v1339 = vld [vmem:[%s5 + $0x38] sm:$0xf]
  %v1340 = vld [vmem:[%s5 + $0x3c] sm:$0xf]
  %v1342 = vperm.slane %v689, 0
  %v1360 = vunpack.c.l.b16 %v1325
  %v1361 = vunpack.c.l.b16 %v1326
  %v1362 = vunpack.c.l.b16 %v1327
  %v1363 = vunpack.c.l.b16 %v1328
  %v1364 = vunpack.c.l.b16 %v1329
  %v1365 = vunpack.c.l.b16 %v1330
  %v1366 = vunpack.c.l.b16 %v1331
  %v1367 = vunpack.c.l.b16 %v1332
  %v1368 = vunpack.c.l.b16 %v1333
  %v1369 = vunpack.c.l.b16 %v1334
  %v1370 = vunpack.c.l.b16 %v1335
  %v1371 = vunpack.c.l.b16 %v1336
  %v1372 = vunpack.c.l.b16 %v1337
  %v1373 = vunpack.c.l.b16 %v1338
  %v1374 = vunpack.c.l.b16 %v1339
  %v1375 = vunpack.c.l.b16 %v1340
  %v1376 = vpack.c.b16 %v1361, %v1360
  %v1377 = vpack.c.b16 %v1363, %v1362
  %v1378 = vpack.c.b16 %v1365, %v1364
  %v1379 = vpack.c.b16 %v1367, %v1366
  %v1380 = vpack.c.b16 %v1369, %v1368
  %v1381 = vpack.c.b16 %v1371, %v1370
  %v1382 = vpack.c.b16 %v1373, %v1372
  %v1383 = vpack.c.b16 %v1375, %v1374
  %1392 = vmatpush.bf16.msra.mxu0 %v1383
  %1393 = vmatpush.bf16.msra.mxu0 %v1382
  %1394 = vmatpush.bf16.msra.mxu0 %v1381
  %1395 = vmatpush.bf16.msra.mxu0 %v1380
  %1396 = vmatpush.bf16.msra.mxu0 %v1379
  %1397 = vmatpush.bf16.msra.mxu0 %v1378
  %1398 = vmatpush.bf16.msra.mxu0 %v1377
  %1399 = vmatpush.bf16.msra.mxu0 %v1376
  %1400 = vmatmul.bf16.gmra.mxu0 %v1309
  %v1401 = vpop.f32.mrf.mxu0
  %v1402 = vadd.f32 %v1342, %v1401
  %v1403 = vpop.f32.mrf.mxu0
  %v1404 = vadd.f32 %v1342, %v1403
  %1405 = vmatmul.bf16.gmra.mxu0 %v1310
  %v1406 = vpop.f32.mrf.mxu0
  %v1407 = vadd.f32 %v1342, %v1406
  %v1408 = vpop.f32.mrf.mxu0
  %v1409 = vadd.f32 %v1342, %v1408
  %1410 = vmatmul.bf16.gmra.mxu0 %v1311
  %v1411 = vpop.f32.mrf.mxu0
  %v1412 = vadd.f32 %v1342, %v1411
  %v1413 = vpop.f32.mrf.mxu0
  %v1414 = vadd.f32 %v1342, %v1413
  %1415 = vmatmul.bf16.gmra.mxu0 %v1312
  %v1416 = vpop.f32.mrf.mxu0
  %v1417 = vadd.f32 %v1342, %v1416
  %v1418 = vpop.f32.mrf.mxu0
  %v1419 = vadd.f32 %v1342, %v1418
  %1420 = vmatmul.bf16.gmra.mxu0 %v1313
  %v1421 = vpop.f32.mrf.mxu0
  %v1422 = vadd.f32 %v1342, %v1421
  %v1423 = vpop.f32.mrf.mxu0
  %v1424 = vadd.f32 %v1342, %v1423
  %1425 = vmatmul.bf16.gmra.mxu0 %v1314
  %v1426 = vpop.f32.mrf.mxu0
  %v1427 = vadd.f32 %v1342, %v1426
  %v1428 = vpop.f32.mrf.mxu0
  %v1429 = vadd.f32 %v1342, %v1428
  %1430 = vmatmul.bf16.gmra.mxu0 %v1315
  %v1431 = vpop.f32.mrf.mxu0
  %v1432 = vadd.f32 %v1342, %v1431
  %v1433 = vpop.f32.mrf.mxu0
  %v1434 = vadd.f32 %v1342, %v1433
  %1435 = vmatmul.bf16.gmra.mxu0 %v1316
  %v1436 = vpop.f32.mrf.mxu0
  %v1437 = vadd.f32 %v1342, %v1436
  %v1438 = vpop.f32.mrf.mxu0
  %v1439 = vadd.f32 %v1342, %v1438
  %1440 = vmatmul.bf16.gmra.mxu0 %v1317
  %v1441 = vpop.f32.mrf.mxu0
  %v1442 = vadd.f32 %v1342, %v1441
  %v1443 = vpop.f32.mrf.mxu0
  %v1444 = vadd.f32 %v1342, %v1443
  %1445 = vmatmul.bf16.gmra.mxu0 %v1318
  %v1446 = vpop.f32.mrf.mxu0
  %v1447 = vadd.f32 %v1342, %v1446
  %v1448 = vpop.f32.mrf.mxu0
  %v1449 = vadd.f32 %v1342, %v1448
  %1450 = vmatmul.bf16.gmra.mxu0 %v1319
  %v1451 = vpop.f32.mrf.mxu0
  %v1452 = vadd.f32 %v1342, %v1451
  %v1453 = vpop.f32.mrf.mxu0
  %v1454 = vadd.f32 %v1342, %v1453
  %1455 = vmatmul.bf16.gmra.mxu0 %v1320
  %v1456 = vpop.f32.mrf.mxu0
  %v1457 = vadd.f32 %v1342, %v1456
  %v1458 = vpop.f32.mrf.mxu0
  %v1459 = vadd.f32 %v1342, %v1458
  %1460 = vmatmul.bf16.gmra.mxu0 %v1321
  %v1461 = vpop.f32.mrf.mxu0
  %v1462 = vadd.f32 %v1342, %v1461
  %v1463 = vpop.f32.mrf.mxu0
  %v1464 = vadd.f32 %v1342, %v1463
  %1465 = vmatmul.bf16.gmra.mxu0 %v1322
  %v1466 = vpop.f32.mrf.mxu0
  %v1467 = vadd.f32 %v1342, %v1466
  %v1468 = vpop.f32.mrf.mxu0
  %v1469 = vadd.f32 %v1342, %v1468
  %1470 = vmatmul.bf16.gmra.mxu0 %v1323
  %v1471 = vpop.f32.mrf.mxu0
  %v1472 = vadd.f32 %v1342, %v1471
  %v1473 = vpop.f32.mrf.mxu0
  %v1474 = vadd.f32 %v1342, %v1473
  %1475 = vmatmul.bf16.gmra.mxu0 %v1324
  %v1476 = vpop.f32.mrf.mxu0
  %v1477 = vadd.f32 %v1342, %v1476
  %v1478 = vpop.f32.mrf.mxu0
  %v1479 = vadd.f32 %v1342, %v1478
  %1480 = vdwg.mxu0
  %1481 = vst [vmem:[%s7] sm:$0xff] %v1402
  %1482 = vst [vmem:[%s7 + $0x8] sm:$0xff] %v1404
  %1483 = vst [vmem:[%s7 + $0x10] sm:$0xff] %v1407
  %1484 = vst [vmem:[%s7 + $0x18] sm:$0xff] %v1409
  %1485 = vst [vmem:[%s7 + $0x20] sm:$0xff] %v1412
  %1486 = vst [vmem:[%s7 + $0x28] sm:$0xff] %v1414
  %1487 = vst [vmem:[%s7 + $0x30] sm:$0xff] %v1417
  %1488 = vst [vmem:[%s7 + $0x38] sm:$0xff] %v1419
  %1489 = vst [vmem:[%s7 + $0x40] sm:$0xff] %v1422
  %1490 = vst [vmem:[%s7 + $0x48] sm:$0xff] %v1424
  %1491 = vst [vmem:[%s7 + $0x50] sm:$0xff] %v1427
  %1492 = vst [vmem:[%s7 + $0x58] sm:$0xff] %v1429
  %1493 = vst [vmem:[%s7 + $0x60] sm:$0xff] %v1432
  %1494 = vst [vmem:[%s7 + $0x68] sm:$0xff] %v1434
  %1495 = vst [vmem:[%s7 + $0x70] sm:$0xff] %v1437
  %1496 = vst [vmem:[%s7 + $0x78] sm:$0xff] %v1439
  %1497 = vst [vmem:[%s7 + $0x80] sm:$0xff] %v1442
  %1498 = vst [vmem:[%s7 + $0x88] sm:$0xff] %v1444
  %1499 = vst [vmem:[%s7 + $0x90] sm:$0xff] %v1447
  %1500 = vst [vmem:[%s7 + $0x98] sm:$0xff] %v1449
  %1501 = vst [vmem:[%s7 + $0xa0] sm:$0xff] %v1452
  %1502 = vst [vmem:[%s7 + $0xa8] sm:$0xff] %v1454
  %1503 = vst [vmem:[%s7 + $0xb0] sm:$0xff] %v1457
  %1504 = vst [vmem:[%s7 + $0xb8] sm:$0xff] %v1459
  %1505 = vst [vmem:[%s7 + $0xc0] sm:$0xff] %v1462
  %1506 = vst [vmem:[%s7 + $0xc8] sm:$0xff] %v1464
  %1507 = vst [vmem:[%s7 + $0xd0] sm:$0xff] %v1467
  %1508 = vst [vmem:[%s7 + $0xd8] sm:$0xff] %v1469
  %1509 = vst [vmem:[%s7 + $0xe0] sm:$0xff] %v1472
  %1510 = vst [vmem:[%s7 + $0xe8] sm:$0xff] %v1474
  %1511 = vst [vmem:[%s7 + $0xf0] sm:$0xff] %v1477
  %1512 = vst [vmem:[%s7 + $0xf8] sm:$0xff] %v1479
  // Predicated region
  $region30: #{_lambda_.1} parent=0 // pred_check
    _
  $region31: #{_lambda_.1} parent=0 // pred_check_branch
    %1514 = sbr.rel (0) target = $region33
  $region32: #{_lambda_.1} parent=0 // pred_region
    _
  $region33: #{_lambda_.1} parent=0 // pred_fallthru
    _
  // Predicated region
  $region34: #{_lambda_.1} parent=0 // pred_check
    _
  $region35: #{_lambda_.1} parent=0 // pred_check_branch
    %1516 = sbr.rel (0) target = $region37
  $region36: #{_lambda_.1} parent=0 // pred_region
    _
  $region37: #{_lambda_.1} parent=0 // pred_fallthru
    _

</llo_original>
